<compile_context>
chip_gen: v7x
topology: tpu7x:2x2x1
jax: 0.10.0
libtpu: 0.0.40
codegen_flags: <defaults>
</compile_context>

<pallas_src>
import functools

import jax
import jax.numpy as jnp
from jax.experimental import pallas as pl
from jax.experimental.pallas import tpu as pltpu

_NEG_BIG = -1e30  # effectively -inf for the masked max (real scores are O(1))


def _round_up(v, m):
    return ((v + m - 1) // m) * m


def _conv_max_kernel(x_ref, w_ref, b_ref, tmask_ref, o_ref, *,
                     time_chunk, compute_dtype):
    """In-kernel window formation + masked max-over-time + bias + ReLU.

    x_ref    : (TB, L, D)          input tile (caller dtype; cast here to compute_dtype)
    w_ref    : (fs_max, D, F_pad)  per-tap fused weights; tap r of a group whose
                                   filter_size <= r is zero
    b_ref    : (1, F_pad)          fused bias (f32)
    tmask_ref: (T_tail, F_pad)     0 where a trailing window start is valid, -1e30 else
    o_ref    : (TB, F_pad)         f32 output
    """
    TB, L, D = x_ref.shape
    fs_max = w_ref.shape[0]
    F_pad = o_ref.shape[1]
    T_tail = tmask_ref.shape[0]
    Lh = L - fs_max + 1                      # window starts valid for EVERY group
    dn = (((2,), (0,)), ((), ()))            # contract over D

    def chunk_scores(t0, n):
        # Conv scores for window starts [t0, t0+n): one K=D matmul per tap on a
        # sublane-shifted slice of the chunk (+ halo), f32 accumulation on the MXU.
        xc = x_ref[:, t0:t0 + n + fs_max - 1, :].astype(compute_dtype)
        s = jax.lax.dot_general(xc[:, 0:n, :], w_ref[0], dn,
                                preferred_element_type=jnp.float32)
        for r in range(1, fs_max):
            s = s + jax.lax.dot_general(xc[:, r:r + n, :], w_ref[r], dn,
                                        preferred_element_type=jnp.float32)
        return s                                              # (TB, n, F_pad) f32

    # ---- head: chunk the time axis, fold into a running max (bounds VMEM) ----
    running = jnp.full((TB, F_pad), _NEG_BIG, dtype=jnp.float32)
    t0 = 0
    while t0 < Lh:                                            # static python loop
        n = min(time_chunk, Lh - t0)
        running = jnp.maximum(running, jnp.max(chunk_scores(t0, n), axis=1))
        t0 += n

    # ---- tail: last fs_max - fs_min window starts, valid only for smaller filters.
    # Row indices are clamped to L-1: a clamped read only ever feeds a zero-weight
    # tap or a row the tail mask kills, so the fusion stays exact.
    rows = []
    for j in range(T_tail):
        t = Lh + j
        s = None
        for r in range(fs_max):
            idx = min(t + r, L - 1)
            c = jax.lax.dot_general(
                x_ref[:, idx:idx + 1, :].astype(compute_dtype), w_ref[r], dn,
                preferred_element_type=jnp.float32)
            s = c if s is None else s + c
        rows.append(s)
    tail = jnp.concatenate(rows, axis=1) + tmask_ref[...][None, :, :]
    running = jnp.maximum(running, jnp.max(tail, axis=1))

    # ---- epilogue: bias + ReLU hoisted past the max (exact), tiny f32 work ----
    o_ref[...] = jnp.maximum(running + b_ref[...], 0.0)


def conv_features(x_nld, weights, biases, *, compute_dtype=jnp.bfloat16,
                  time_chunk=256, vmem_budget_bytes=20 * 1024 * 1024):
    """Fused Pallas ConvFeatures forward.

    x_nld  : (B, L, D) (the NCHW input with its singleton channel squeezed)
    weights: list of (fs, D, F) — PyTorch Conv2d weight (F,1,fs,D) transposed to (fs,D,F)
    biases : list of (F,)
    returns: (B, sum(F)) float32
    """
    B, L, D = x_nld.shape
    fss = [int(w.shape[0]) for w in weights]
    Fs = [int(w.shape[2]) for w in weights]
    fs_max, fs_min = max(fss), min(fss)
    assert L >= fs_max, "sequence shorter than the largest filter"
    F_total = sum(Fs)
    F_pad = _round_up(F_total, 128)          # lane-dense output columns
    Lh = L - fs_max + 1
    T_tail = max(fs_max - fs_min, 1)

    # ---- per-tap fused weights (fs_max, D, F_pad), bias, trailing-window mask ----
    w_taps = jnp.concatenate(
        [jnp.pad(w, ((0, fs_max - fs), (0, 0), (0, 0)))
         for w, fs in zip(weights, fss)], axis=2)                    # (fs_max, D, F_total)
    w_taps = jnp.pad(w_taps, ((0, 0), (0, 0), (0, F_pad - F_total))
                     ).astype(compute_dtype)
    b_big = jnp.pad(jnp.concatenate([jnp.reshape(b, (-1,)) for b in biases]),
                    (0, F_pad - F_total)).astype(jnp.float32).reshape(1, F_pad)
    # Tail row j (window start Lh + j) is valid for group fs iff j <= fs_max - fs - 1.
    last_valid = jnp.concatenate(
        [jnp.full((F_g,), fs_max - fs - 1, jnp.int32) for fs, F_g in zip(fss, Fs)])
    last_valid = jnp.pad(last_valid, (0, F_pad - F_total), constant_values=T_tail)
    j_idx = jnp.arange(T_tail, dtype=jnp.int32)[:, None]
    tail_mask = jnp.where(j_idx <= last_valid[None, :], 0.0, _NEG_BIG
                          ).astype(jnp.float32)

    # ---- batch tile from an explicit VMEM budget (v7x: 64 MiB physical;
    #      v5e scoped default is 16 MiB -> limit raised to 32 MiB below) ----
    tc = min(time_chunk, Lh)
    x_item = jnp.dtype(x_nld.dtype).itemsize
    c_item = jnp.dtype(compute_dtype).itemsize
    lane_D = _round_up(D, 128)               # VMEM lane padding of the narrow x tile
    per_row = (2 * L * lane_D * x_item                  # double-buffered x block
               + 2 * F_pad * 4                          # double-buffered out block
               + (tc + fs_max) * lane_D * c_item        # cast chunk(+halo) value
               + (tc + T_tail + 4) * F_pad * 4)         # f32 scores chunk/tail/run-max
    resident = (2 * fs_max * lane_D * F_pad * c_item    # weights
                + 2 * (T_tail + 9) * F_pad * 4)         # bias + tail mask
    tb_budget = max(8, ((vmem_budget_bytes - resident) // per_row) // 8 * 8)
    if B <= 8:
        TB = B                                          # block == full batch extent
    else:
        tb_split = _round_up(pl.cdiv(B, 4), 8)          # >= 4 grid steps when B is big
        TB = int(max(8, min(tb_budget, tb_split)))
    grid = (pl.cdiv(B, TB),)

    kernel = functools.partial(_conv_max_kernel, time_chunk=tc,
                               compute_dtype=compute_dtype)
    out = pl.pallas_call(
        kernel,
        out_shape=jax.ShapeDtypeStruct((B, F_pad), jnp.float32),
        grid=grid,
        in_specs=[
            pl.BlockSpec((TB, L, D), lambda i: (i, 0, 0)),
            pl.BlockSpec((fs_max, D, F_pad), lambda i: (0, 0, 0)),
            pl.BlockSpec((1, F_pad), lambda i: (0, 0)),
            pl.BlockSpec((T_tail, F_pad), lambda i: (0, 0)),
        ],
        out_specs=pl.BlockSpec((TB, F_pad), lambda i: (i, 0)),
        compiler_params=pltpu.CompilerParams(
            dimension_semantics=("parallel",),
            vmem_limit_bytes=32 * 1024 * 1024),
    )(x_nld, w_taps, b_big, tail_mask)

    # TODO(synk): nn.Dropout — identity in eval mode; training-mode dropout
    # (random mask + 1/(1-p) scaling) not applied.  Only the args.act == 1 (ReLU)
    # activation branch is implemented (ELU/LeakyReLU would only change the epilogue).
    return out[:, :F_total]


def _reference(x_nld, weights, biases):
    """Pure-JAX reference using an independent per-group formulation."""
    feats = []
    for w, b in zip(weights, biases):
        fs, D, F = w.shape
        L = x_nld.shape[1]
        L_out = L - fs + 1
        windows = jnp.stack([x_nld[:, r:r + L_out, :] for r in range(fs)], axis=2)
        y = jnp.einsum("blrd,rdf->blf", windows, w) + b[None, None, :]
        y = jnp.maximum(y, 0.0)
        feats.append(jnp.max(y, axis=1))
    return jnp.concatenate(feats, axis=1)


if __name__ == "__main__":
    # Small shapes consistent with the module's forward.
    B = 2                 # batch
    L = 16                # sequence length (conv "height")
    D = 32                # word_dimension (conv "width" == kernel width)
    filter_lengths = (3, 4, 5)
    filter_counts = (8, 16, 8)
    dropout_rate = 0.5    # identity at inference

    key = jax.random.PRNGKey(0)
    key, kx = jax.random.split(key)
    # PyTorch forward input is NCHW (B, 1, L, D); squeeze channel for the kernel.
    x_nchw = jax.random.normal(kx, (B, 1, L, D), dtype=jnp.float32)
    x_nld = x_nchw[:, 0, :, :]

    weights, biases = [], []
    for fs, F in zip(filter_lengths, filter_counts):
        key, kw, kb = jax.random.split(key, 3)
        # kaiming_normal_(mode='fan_out', nonlinearity='relu') for Conv2d weight
        # of shape (F, 1, fs, D): fan_out = F * fs * D, std = sqrt(2 / fan_out).
        fan_out = F * fs * D
        std = (2.0 / fan_out) ** 0.5
        w_torch_layout = std * jax.random.normal(kw, (F, 1, fs, D), dtype=jnp.float32)
        weights.append(jnp.transpose(w_torch_layout[:, 0, :, :], (1, 2, 0)))  # (fs, D, F)
        # Module inits bias to zero; small non-zero values here exercise the
        # bias + ReLU epilogue in the correctness check.
        biases.append(0.05 * jax.random.normal(kb, (F,), dtype=jnp.float32))

    ref = _reference(x_nld, weights, biases)

    # f32 MXU operands: tight check against the reference.
    out_f32 = jax.block_until_ready(
        conv_features(x_nld, weights, biases, compute_dtype=jnp.float32))
    assert out_f32.shape == (B, sum(filter_counts)), out_f32.shape
    assert jnp.allclose(out_f32, ref, atol=1e-4, rtol=1e-4), "f32 mismatch vs reference"

    # Default path: bf16 MXU operands, f32 accumulation — loose tolerance.
    out_bf16 = jax.block_until_ready(conv_features(x_nld, weights, biases))
    assert out_bf16.shape == (B, sum(filter_counts)), out_bf16.shape
    assert jnp.allclose(out_bf16, ref, atol=5e-2, rtol=5e-2), "bf16 mismatch vs reference"

    print("KERNEL_OK")
</pallas_src>

<mosaic_0001>
module attributes {stable_mosaic.version = 11 : i64} {
  func.func @_conv_max_kernel(%arg0: i32, %arg1: memref<2x16x32xf32, #tpu.memory_space<vmem>>, %arg2: memref<5x32x128xf32, #tpu.memory_space<vmem>>, %arg3: memref<1x128xf32, #tpu.memory_space<vmem>>, %arg4: memref<2x128xf32, #tpu.memory_space<vmem>>, %arg5: memref<2x128xf32, #tpu.memory_space<vmem>>) attributes {dimension_semantics = [#tpu.dimension_semantics<parallel>], iteration_bounds = array<i64: 1>, scalar_prefetch = 0 : i64, scratch_operands = 0 : i64, tpu.core_type = #tpu.core_type<tc>, window_params = [{transform_indices = @transform_0, window_bounds = array<i64: 2, 16, 32>}, {pipeline_mode = #tpu.pipeline_mode<synchronous>, transform_indices = @transform_1, window_bounds = array<i64: 5, 32, 128>}, {pipeline_mode = #tpu.pipeline_mode<synchronous>, transform_indices = @transform_2, window_bounds = array<i64: 1, 128>}, {pipeline_mode = #tpu.pipeline_mode<synchronous>, transform_indices = @transform_3, window_bounds = array<i64: 2, 128>}, {transform_indices = @transform_4, window_bounds = array<i64: 2, 128>}]} {
    %cst = arith.constant -1.000000e+30 : f32
    %0 = vector.broadcast %cst : f32 to vector<2x128xf32>
    %c0 = arith.constant 0 : index
    %c0_0 = arith.constant 0 : index
    %c0_1 = arith.constant 0 : index
    %1 = vector.load %arg1[%c0, %c0_0, %c0_1] : memref<2x16x32xf32, #tpu.memory_space<vmem>>, vector<2x16x32xf32>
    %2 = vector.extract_strided_slice %1 {offsets = [0, 0, 0], sizes = [2, 12, 32], strides = [1, 1, 1]} : vector<2x16x32xf32> to vector<2x12x32xf32>
    %c0_2 = arith.constant 0 : index
    %c0_3 = arith.constant 0 : index
    %c0_4 = arith.constant 0 : index
    %3 = vector.load %arg2[%c0_2, %c0_3, %c0_4] : memref<5x32x128xf32, #tpu.memory_space<vmem>>, vector<1x32x128xf32>
    %4 = vector.shape_cast %3 : vector<1x32x128xf32> to vector<32x128xf32>
    %cst_5 = arith.constant dense<0.000000e+00> : vector<2x12x128xf32>
    %5 = tpu.matmul %2, %4, %cst_5 {dimension_numbers = #tpu.dot_dimension_numbers<[2], [0], [0, 1], [1], [0, 0, 0, 1, 1, 1], [], []>} : vector<2x12x32xf32>, vector<32x128xf32>, vector<2x12x128xf32> -> vector<2x12x128xf32>
    %6 = vector.extract_strided_slice %1 {offsets = [0, 1, 0], sizes = [2, 12, 32], strides = [1, 1, 1]} : vector<2x16x32xf32> to vector<2x12x32xf32>
    %c1 = arith.constant 1 : index
    %c0_6 = arith.constant 0 : index
    %c0_7 = arith.constant 0 : index
    %7 = vector.load %arg2[%c1, %c0_6, %c0_7] : memref<5x32x128xf32, #tpu.memory_space<vmem>>, vector<1x32x128xf32>
    %8 = vector.shape_cast %7 : vector<1x32x128xf32> to vector<32x128xf32>
    %cst_8 = arith.constant dense<0.000000e+00> : vector<2x12x128xf32>
    %9 = tpu.matmul %6, %8, %cst_8 {dimension_numbers = #tpu.dot_dimension_numbers<[2], [0], [0, 1], [1], [0, 0, 0, 1, 1, 1], [], []>} : vector<2x12x32xf32>, vector<32x128xf32>, vector<2x12x128xf32> -> vector<2x12x128xf32>
    %10 = arith.addf %5, %9 : vector<2x12x128xf32>
    %11 = vector.extract_strided_slice %1 {offsets = [0, 2, 0], sizes = [2, 12, 32], strides = [1, 1, 1]} : vector<2x16x32xf32> to vector<2x12x32xf32>
    %c2 = arith.constant 2 : index
    %c0_9 = arith.constant 0 : index
    %c0_10 = arith.constant 0 : index
    %12 = vector.load %arg2[%c2, %c0_9, %c0_10] : memref<5x32x128xf32, #tpu.memory_space<vmem>>, vector<1x32x128xf32>
    %13 = vector.shape_cast %12 : vector<1x32x128xf32> to vector<32x128xf32>
    %cst_11 = arith.constant dense<0.000000e+00> : vector<2x12x128xf32>
    %14 = tpu.matmul %11, %13, %cst_11 {dimension_numbers = #tpu.dot_dimension_numbers<[2], [0], [0, 1], [1], [0, 0, 0, 1, 1, 1], [], []>} : vector<2x12x32xf32>, vector<32x128xf32>, vector<2x12x128xf32> -> vector<2x12x128xf32>
    %15 = arith.addf %10, %14 : vector<2x12x128xf32>
    %16 = vector.extract_strided_slice %1 {offsets = [0, 3, 0], sizes = [2, 12, 32], strides = [1, 1, 1]} : vector<2x16x32xf32> to vector<2x12x32xf32>
    %c3 = arith.constant 3 : index
    %c0_12 = arith.constant 0 : index
    %c0_13 = arith.constant 0 : index
    %17 = vector.load %arg2[%c3, %c0_12, %c0_13] : memref<5x32x128xf32, #tpu.memory_space<vmem>>, vector<1x32x128xf32>
    %18 = vector.shape_cast %17 : vector<1x32x128xf32> to vector<32x128xf32>
    %cst_14 = arith.constant dense<0.000000e+00> : vector<2x12x128xf32>
    %19 = tpu.matmul %16, %18, %cst_14 {dimension_numbers = #tpu.dot_dimension_numbers<[2], [0], [0, 1], [1], [0, 0, 0, 1, 1, 1], [], []>} : vector<2x12x32xf32>, vector<32x128xf32>, vector<2x12x128xf32> -> vector<2x12x128xf32>
    %20 = arith.addf %15, %19 : vector<2x12x128xf32>
    %21 = vector.extract_strided_slice %1 {offsets = [0, 4, 0], sizes = [2, 12, 32], strides = [1, 1, 1]} : vector<2x16x32xf32> to vector<2x12x32xf32>
    %c4 = arith.constant 4 : index
    %c0_15 = arith.constant 0 : index
    %c0_16 = arith.constant 0 : index
    %22 = vector.load %arg2[%c4, %c0_15, %c0_16] : memref<5x32x128xf32, #tpu.memory_space<vmem>>, vector<1x32x128xf32>
    %23 = vector.shape_cast %22 : vector<1x32x128xf32> to vector<32x128xf32>
    %cst_17 = arith.constant dense<0.000000e+00> : vector<2x12x128xf32>
    %24 = tpu.matmul %21, %23, %cst_17 {dimension_numbers = #tpu.dot_dimension_numbers<[2], [0], [0, 1], [1], [0, 0, 0, 1, 1, 1], [], []>} : vector<2x12x32xf32>, vector<32x128xf32>, vector<2x12x128xf32> -> vector<2x12x128xf32>
    %25 = arith.addf %20, %24 : vector<2x12x128xf32>
    %cst_18 = arith.constant dense<0xFF800000> : vector<2x128xf32>
    %26 = vector.multi_reduction <maximumf>, %25, %cst_18 [1] : vector<2x12x128xf32> to vector<2x128xf32>
    %27 = arith.maximumf %0, %26 : vector<2x128xf32>
    %c0_19 = arith.constant 0 : index
    %c12 = arith.constant 12 : index
    %c0_20 = arith.constant 0 : index
    %28 = vector.load %arg1[%c0_19, %c12, %c0_20] : memref<2x16x32xf32, #tpu.memory_space<vmem>>, vector<2x1x32xf32>
    %c0_21 = arith.constant 0 : index
    %c0_22 = arith.constant 0 : index
    %c0_23 = arith.constant 0 : index
    %29 = vector.load %arg2[%c0_21, %c0_22, %c0_23] : memref<5x32x128xf32, #tpu.memory_space<vmem>>, vector<1x32x128xf32>
    %30 = vector.shape_cast %29 : vector<1x32x128xf32> to vector<32x128xf32>
    %cst_24 = arith.constant dense<0.000000e+00> : vector<2x1x128xf32>
    %31 = tpu.matmul %28, %30, %cst_24 {dimension_numbers = #tpu.dot_dimension_numbers<[2], [0], [0, 1], [1], [0, 0, 0, 1, 1, 1], [], []>} : vector<2x1x32xf32>, vector<32x128xf32>, vector<2x1x128xf32> -> vector<2x1x128xf32>
    %c0_25 = arith.constant 0 : index
    %c13 = arith.constant 13 : index
    %c0_26 = arith.constant 0 : index
    %32 = vector.load %arg1[%c0_25, %c13, %c0_26] : memref<2x16x32xf32, #tpu.memory_space<vmem>>, vector<2x1x32xf32>
    %c1_27 = arith.constant 1 : index
    %c0_28 = arith.constant 0 : index
    %c0_29 = arith.constant 0 : index
    %33 = vector.load %arg2[%c1_27, %c0_28, %c0_29] : memref<5x32x128xf32, #tpu.memory_space<vmem>>, vector<1x32x128xf32>
    %34 = vector.shape_cast %33 : vector<1x32x128xf32> to vector<32x128xf32>
    %cst_30 = arith.constant dense<0.000000e+00> : vector<2x1x128xf32>
    %35 = tpu.matmul %32, %34, %cst_30 {dimension_numbers = #tpu.dot_dimension_numbers<[2], [0], [0, 1], [1], [0, 0, 0, 1, 1, 1], [], []>} : vector<2x1x32xf32>, vector<32x128xf32>, vector<2x1x128xf32> -> vector<2x1x128xf32>
    %36 = arith.addf %31, %35 : vector<2x1x128xf32>
    %c0_31 = arith.constant 0 : index
    %c14 = arith.constant 14 : index
    %c0_32 = arith.constant 0 : index
    %37 = vector.load %arg1[%c0_31, %c14, %c0_32] : memref<2x16x32xf32, #tpu.memory_space<vmem>>, vector<2x1x32xf32>
    %c2_33 = arith.constant 2 : index
    %c0_34 = arith.constant 0 : index
    %c0_35 = arith.constant 0 : index
    %38 = vector.load %arg2[%c2_33, %c0_34, %c0_35] : memref<5x32x128xf32, #tpu.memory_space<vmem>>, vector<1x32x128xf32>
    %39 = vector.shape_cast %38 : vector<1x32x128xf32> to vector<32x128xf32>
    %cst_36 = arith.constant dense<0.000000e+00> : vector<2x1x128xf32>
    %40 = tpu.matmul %37, %39, %cst_36 {dimension_numbers = #tpu.dot_dimension_numbers<[2], [0], [0, 1], [1], [0, 0, 0, 1, 1, 1], [], []>} : vector<2x1x32xf32>, vector<32x128xf32>, vector<2x1x128xf32> -> vector<2x1x128xf32>
    %41 = arith.addf %36, %40 : vector<2x1x128xf32>
    %c0_37 = arith.constant 0 : index
    %c15 = arith.constant 15 : index
    %c0_38 = arith.constant 0 : index
    %42 = vector.load %arg1[%c0_37, %c15, %c0_38] : memref<2x16x32xf32, #tpu.memory_space<vmem>>, vector<2x1x32xf32>
    %c3_39 = arith.constant 3 : index
    %c0_40 = arith.constant 0 : index
    %c0_41 = arith.constant 0 : index
    %43 = vector.load %arg2[%c3_39, %c0_40, %c0_41] : memref<5x32x128xf32, #tpu.memory_space<vmem>>, vector<1x32x128xf32>
    %44 = vector.shape_cast %43 : vector<1x32x128xf32> to vector<32x128xf32>
    %cst_42 = arith.constant dense<0.000000e+00> : vector<2x1x128xf32>
    %45 = tpu.matmul %42, %44, %cst_42 {dimension_numbers = #tpu.dot_dimension_numbers<[2], [0], [0, 1], [1], [0, 0, 0, 1, 1, 1], [], []>} : vector<2x1x32xf32>, vector<32x128xf32>, vector<2x1x128xf32> -> vector<2x1x128xf32>
    %46 = arith.addf %41, %45 : vector<2x1x128xf32>
    %c0_43 = arith.constant 0 : index
    %c15_44 = arith.constant 15 : index
    %c0_45 = arith.constant 0 : index
    %47 = vector.load %arg1[%c0_43, %c15_44, %c0_45] : memref<2x16x32xf32, #tpu.memory_space<vmem>>, vector<2x1x32xf32>
    %c4_46 = arith.constant 4 : index
    %c0_47 = arith.constant 0 : index
    %c0_48 = arith.constant 0 : index
    %48 = vector.load %arg2[%c4_46, %c0_47, %c0_48] : memref<5x32x128xf32, #tpu.memory_space<vmem>>, vector<1x32x128xf32>
    %49 = vector.shape_cast %48 : vector<1x32x128xf32> to vector<32x128xf32>
    %cst_49 = arith.constant dense<0.000000e+00> : vector<2x1x128xf32>
    %50 = tpu.matmul %47, %49, %cst_49 {dimension_numbers = #tpu.dot_dimension_numbers<[2], [0], [0, 1], [1], [0, 0, 0, 1, 1, 1], [], []>} : vector<2x1x32xf32>, vector<32x128xf32>, vector<2x1x128xf32> -> vector<2x1x128xf32>
    %51 = arith.addf %46, %50 : vector<2x1x128xf32>
    %c0_50 = arith.constant 0 : index
    %c13_51 = arith.constant 13 : index
    %c0_52 = arith.constant 0 : index
    %52 = vector.load %arg1[%c0_50, %c13_51, %c0_52] : memref<2x16x32xf32, #tpu.memory_space<vmem>>, vector<2x1x32xf32>
    %c0_53 = arith.constant 0 : index
    %c0_54 = arith.constant 0 : index
    %c0_55 = arith.constant 0 : index
    %53 = vector.load %arg2[%c0_53, %c0_54, %c0_55] : memref<5x32x128xf32, #tpu.memory_space<vmem>>, vector<1x32x128xf32>
    %54 = vector.shape_cast %53 : vector<1x32x128xf32> to vector<32x128xf32>
    %cst_56 = arith.constant dense<0.000000e+00> : vector<2x1x128xf32>
    %55 = tpu.matmul %52, %54, %cst_56 {dimension_numbers = #tpu.dot_dimension_numbers<[2], [0], [0, 1], [1], [0, 0, 0, 1, 1, 1], [], []>} : vector<2x1x32xf32>, vector<32x128xf32>, vector<2x1x128xf32> -> vector<2x1x128xf32>
    %c0_57 = arith.constant 0 : index
    %c14_58 = arith.constant 14 : index
    %c0_59 = arith.constant 0 : index
    %56 = vector.load %arg1[%c0_57, %c14_58, %c0_59] : memref<2x16x32xf32, #tpu.memory_space<vmem>>, vector<2x1x32xf32>
    %c1_60 = arith.constant 1 : index
    %c0_61 = arith.constant 0 : index
    %c0_62 = arith.constant 0 : index
    %57 = vector.load %arg2[%c1_60, %c0_61, %c0_62] : memref<5x32x128xf32, #tpu.memory_space<vmem>>, vector<1x32x128xf32>
    %58 = vector.shape_cast %57 : vector<1x32x128xf32> to vector<32x128xf32>
    %cst_63 = arith.constant dense<0.000000e+00> : vector<2x1x128xf32>
    %59 = tpu.matmul %56, %58, %cst_63 {dimension_numbers = #tpu.dot_dimension_numbers<[2], [0], [0, 1], [1], [0, 0, 0, 1, 1, 1], [], []>} : vector<2x1x32xf32>, vector<32x128xf32>, vector<2x1x128xf32> -> vector<2x1x128xf32>
    %60 = arith.addf %55, %59 : vector<2x1x128xf32>
    %c0_64 = arith.constant 0 : index
    %c15_65 = arith.constant 15 : index
    %c0_66 = arith.constant 0 : index
    %61 = vector.load %arg1[%c0_64, %c15_65, %c0_66] : memref<2x16x32xf32, #tpu.memory_space<vmem>>, vector<2x1x32xf32>
    %c2_67 = arith.constant 2 : index
    %c0_68 = arith.constant 0 : index
    %c0_69 = arith.constant 0 : index
    %62 = vector.load %arg2[%c2_67, %c0_68, %c0_69] : memref<5x32x128xf32, #tpu.memory_space<vmem>>, vector<1x32x128xf32>
    %63 = vector.shape_cast %62 : vector<1x32x128xf32> to vector<32x128xf32>
    %cst_70 = arith.constant dense<0.000000e+00> : vector<2x1x128xf32>
    %64 = tpu.matmul %61, %63, %cst_70 {dimension_numbers = #tpu.dot_dimension_numbers<[2], [0], [0, 1], [1], [0, 0, 0, 1, 1, 1], [], []>} : vector<2x1x32xf32>, vector<32x128xf32>, vector<2x1x128xf32> -> vector<2x1x128xf32>
    %65 = arith.addf %60, %64 : vector<2x1x128xf32>
    %c0_71 = arith.constant 0 : index
    %c15_72 = arith.constant 15 : index
    %c0_73 = arith.constant 0 : index
    %66 = vector.load %arg1[%c0_71, %c15_72, %c0_73] : memref<2x16x32xf32, #tpu.memory_space<vmem>>, vector<2x1x32xf32>
    %c3_74 = arith.constant 3 : index
    %c0_75 = arith.constant 0 : index
    %c0_76 = arith.constant 0 : index
    %67 = vector.load %arg2[%c3_74, %c0_75, %c0_76] : memref<5x32x128xf32, #tpu.memory_space<vmem>>, vector<1x32x128xf32>
    %68 = vector.shape_cast %67 : vector<1x32x128xf32> to vector<32x128xf32>
    %cst_77 = arith.constant dense<0.000000e+00> : vector<2x1x128xf32>
    %69 = tpu.matmul %66, %68, %cst_77 {dimension_numbers = #tpu.dot_dimension_numbers<[2], [0], [0, 1], [1], [0, 0, 0, 1, 1, 1], [], []>} : vector<2x1x32xf32>, vector<32x128xf32>, vector<2x1x128xf32> -> vector<2x1x128xf32>
    %70 = arith.addf %65, %69 : vector<2x1x128xf32>
    %c0_78 = arith.constant 0 : index
    %c15_79 = arith.constant 15 : index
    %c0_80 = arith.constant 0 : index
    %71 = vector.load %arg1[%c0_78, %c15_79, %c0_80] : memref<2x16x32xf32, #tpu.memory_space<vmem>>, vector<2x1x32xf32>
    %c4_81 = arith.constant 4 : index
    %c0_82 = arith.constant 0 : index
    %c0_83 = arith.constant 0 : index
    %72 = vector.load %arg2[%c4_81, %c0_82, %c0_83] : memref<5x32x128xf32, #tpu.memory_space<vmem>>, vector<1x32x128xf32>
    %73 = vector.shape_cast %72 : vector<1x32x128xf32> to vector<32x128xf32>
    %cst_84 = arith.constant dense<0.000000e+00> : vector<2x1x128xf32>
    %74 = tpu.matmul %71, %73, %cst_84 {dimension_numbers = #tpu.dot_dimension_numbers<[2], [0], [0, 1], [1], [0, 0, 0, 1, 1, 1], [], []>} : vector<2x1x32xf32>, vector<32x128xf32>, vector<2x1x128xf32> -> vector<2x1x128xf32>
    %75 = arith.addf %70, %74 : vector<2x1x128xf32>
    %76 = tpu.concatenate %51, %75 in 1 : vector<2x1x128xf32>, vector<2x1x128xf32> -> vector<2x2x128xf32>
    %c0_85 = arith.constant 0 : index
    %c0_86 = arith.constant 0 : index
    %77 = vector.load %arg4[%c0_85, %c0_86] : memref<2x128xf32, #tpu.memory_space<vmem>>, vector<2x128xf32>
    %78 = vector.shape_cast %77 : vector<2x128xf32> to vector<1x2x128xf32>
    %79 = vector.broadcast %78 : vector<1x2x128xf32> to vector<2x2x128xf32>
    %80 = arith.addf %76, %79 : vector<2x2x128xf32>
    %cst_87 = arith.constant dense<0xFF800000> : vector<2x128xf32>
    %81 = vector.multi_reduction <maximumf>, %80, %cst_87 [1] : vector<2x2x128xf32> to vector<2x128xf32>
    %82 = arith.maximumf %27, %81 : vector<2x128xf32>
    %c0_88 = arith.constant 0 : index
    %c0_89 = arith.constant 0 : index
    %83 = vector.load %arg3[%c0_88, %c0_89] : memref<1x128xf32, #tpu.memory_space<vmem>>, vector<1x128xf32>
    %84 = vector.broadcast %83 : vector<1x128xf32> to vector<2x128xf32>
    %85 = arith.addf %82, %84 : vector<2x128xf32>
    %cst_90 = arith.constant 0.000000e+00 : f32
    %86 = vector.broadcast %cst_90 : f32 to vector<2x128xf32>
    %87 = arith.maximumf %85, %86 : vector<2x128xf32>
    %c0_91 = arith.constant 0 : index
    %c0_92 = arith.constant 0 : index
    %88 = vector.load %arg5[%c0_91, %c0_92] : memref<2x128xf32, #tpu.memory_space<vmem>>, vector<2x128xf32>
    tpu.vector_store %arg5[%c0_91, %c0_92], %87 {strides = array<i32>} : memref<2x128xf32, #tpu.memory_space<vmem>>, vector<2x128xf32>,
    return
  }
  func.func @transform_0(%arg0: i32) -> (i32, i32, i32) {
    %c0_i32 = arith.constant 0 : i32
    %c0_i32_0 = arith.constant 0 : i32
    %c0_i32_1 = arith.constant 0 : i32
    return %arg0, %c0_i32, %c0_i32_0 : i32, i32, i32
  }
  func.func @transform_1(%arg0: i32) -> (i32, i32, i32) {
    %c0_i32 = arith.constant 0 : i32
    %c0_i32_0 = arith.constant 0 : i32
    %c0_i32_1 = arith.constant 0 : i32
    %c0_i32_2 = arith.constant 0 : i32
    return %c0_i32, %c0_i32_0, %c0_i32_1 : i32, i32, i32
  }
  func.func @transform_2(%arg0: i32) -> (i32, i32) {
    %c0_i32 = arith.constant 0 : i32
    %c0_i32_0 = arith.constant 0 : i32
    %c0_i32_1 = arith.constant 0 : i32
    return %c0_i32, %c0_i32_0 : i32, i32
  }
  func.func @transform_3(%arg0: i32) -> (i32, i32) {
    %c0_i32 = arith.constant 0 : i32
    %c0_i32_0 = arith.constant 0 : i32
    %c0_i32_1 = arith.constant 0 : i32
    return %c0_i32, %c0_i32_0 : i32, i32
  }
  func.func @transform_4(%arg0: i32) -> (i32, i32) {
    %c0_i32 = arith.constant 0 : i32
    %c0_i32_0 = arith.constant 0 : i32
    return %arg0, %c0_i32 : i32, i32
  }
}

</mosaic_0001>

<llo_original>
// kernel: tpu_custom_call.1
$region0: #{tpu_custom_call.1}
  #allocation0 [shape = 'u32[]', space=smem, size = 0x4, offset = 0x4, fixed_abs, tag = 'smem constant byte address 0x4 - core index']
  #allocation1 [shape = 'u32[144,128]{1,0:T(1,128)}', space=vmem, size = 0x12000, scoped, tag = 'internal scratch']
  %s0 = inlined_call_operand.hbm [shape: f32[2,16,32], index: 0, kind: input, shape index: {}]
  %s1 = inlined_call_operand.hbm [shape: f32[5,32,128], index: 1, kind: input, shape index: {}]
  %s2 = inlined_call_operand.vmem [shape: f32[1,128], index: 2, kind: input, shape index: {}]
  %s3 = inlined_call_operand.vmem [shape: f32[2,128], index: 3, kind: input, shape index: {}]
  %s4 = inlined_call_operand.hbm [shape: f32[2,128], index: 4, kind: output, shape index: {}]
  %s5 = sld [smem:[#allocation0]]
  $region34: #{tpu_custom_call.1} parent=0
    _
  %s7 = ssub.s32 1, %s5
  %s8 = scalar_select 0, %s7, %s5
  $region1: #{tpu_custom_call.1} parent=0
    #allocation2 [shape = 'u8[16384]{0}', space=vmem, size = 0x4000, scoped, tag = 'input window, operand 0, single buffered']
    #allocation3 [shape = 's32[1]{0}', space=sflag, size = 0x4, scoped, tag = 'scoped memory for tpu_custom_call.1']
    #allocation4 [shape = 's32[1]{0}', space=sflag, size = 0x4, scoped, tag = 'scoped memory for tpu_custom_call.1']
    #allocation5 [shape = 'u8[81920]{0}', space=vmem, size = 0x14000, scoped, tag = 'input window, operand 1, single buffered']
    #allocation6 [shape = 's32[1]{0}', space=sflag, size = 0x4, scoped, tag = 'scoped memory for tpu_custom_call.1']
    #allocation7 [shape = 'u8[1024]{0}', space=vmem, size = 0x400, scoped, tag = 'output window, operand 0, single buffered']
    %9 = vsyncpa [#allocation3], 0
    %10 = vsyncpa [#allocation6], 0
    %11 = vsyncpa [#allocation4], 0
    // Predicated region
    $region2: #{tpu_custom_call.1} parent=1 // pred_check
      _
    $region3: #{tpu_custom_call.1} parent=1 // pred_check_branch
      %13 = sbr.rel (0) target = $region5
    $region4: #{tpu_custom_call.1} parent=1 // pred_region
      %s15 = ssub.s32 512, 512
      %16 = vsyncadd [#allocation3], %s15
      %s17 = sshll.u32 [#allocation2], 4
      %s18 = int_to_ptr.vmem [resolvable:$true] %s17
      %23 = dma.hbm_to_vmem [thread:$0]  %s0, 512, %s18, [#allocation3], 128, 128, 8
    $region5: #{tpu_custom_call.1} parent=1 // pred_fallthru
      _
    // Predicated region
    $region6: #{tpu_custom_call.1} parent=1 // pred_check
      _
    $region7: #{tpu_custom_call.1} parent=1 // pred_check_branch
      %25 = sbr.rel (0) target = $region9
    $region8: #{tpu_custom_call.1} parent=1 // pred_region
      %s27 = ssub.s32 2560, 2560
      %28 = vsyncadd [#allocation6], %s27
      %s29 = sshll.u32 [#allocation5], 4
      %s30 = int_to_ptr.vmem [resolvable:$true] %s29
      %35 = dma.hbm_to_vmem [thread:$0]  %s1, 2560, %s30, [#allocation6], 128, 128, 8
    $region9: #{tpu_custom_call.1} parent=1 // pred_fallthru
      _
    // Predicated region
    $region10: #{tpu_custom_call.1} parent=1 // pred_check
      _
    $region11: #{tpu_custom_call.1} parent=1 // pred_check_branch
      %37 = sbr.rel (0) target = $region13
    $region12: #{tpu_custom_call.1} parent=1 // pred_region
      _
    $region13: #{tpu_custom_call.1} parent=1 // pred_fallthru
      _
    // Predicated region
    $region14: #{tpu_custom_call.1} parent=1 // pred_check
      _
    $region15: #{tpu_custom_call.1} parent=1 // pred_check_branch
      %39 = sbr.rel (0) target = $region17
    $region16: #{tpu_custom_call.1} parent=1 // pred_region
      _
    $region17: #{tpu_custom_call.1} parent=1 // pred_fallthru
      _
    // Predicated region
    $region18: #{tpu_custom_call.1} parent=1 // pred_check
      _
    $region19: #{tpu_custom_call.1} parent=1 // pred_check_branch
      %41 = sbr.rel (0) target = $region21
    $region20: #{tpu_custom_call.1} parent=1 // pred_region
      %42 = dma.done [#allocation3], 512
    $region21: #{tpu_custom_call.1} parent=1 // pred_fallthru
      _
    // Predicated region
    $region22: #{tpu_custom_call.1} parent=1 // pred_check
      _
    $region23: #{tpu_custom_call.1} parent=1 // pred_check_branch
      %44 = sbr.rel (0) target = $region25
    $region24: #{tpu_custom_call.1} parent=1 // pred_region
      %45 = dma.done [#allocation6], 2560
    $region25: #{tpu_custom_call.1} parent=1 // pred_fallthru
      _
    %v46 = vld [vmem:[#allocation2] sm:$0xff]
    %v47 = vld [vmem:[#allocation2 + $0x8] sm:$0xff]
    %v48 = vld [vmem:[#allocation2 + $0x10] sm:$0xff]
    %v49 = vld [vmem:[#allocation2 + $0x18] sm:$0xff]
    %v50 = vld [vmem:[#allocation5] sm:$0xff]
    %v51 = vld [vmem:[#allocation5 + $0x8] sm:$0xff]
    %v52 = vld [vmem:[#allocation5 + $0x10] sm:$0xff]
    %v53 = vld [vmem:[#allocation5 + $0x18] sm:$0xff]
    %s54 = scalar_lea.vmem [#allocation5], 32
    %v55 = vld [vmem:[%s54] sm:$0xff]
    %v56 = vld [vmem:[%s54 + $0x8] sm:$0xff]
    %v57 = vld [vmem:[%s54 + $0x10] sm:$0xff]
    %v58 = vld [vmem:[%s54 + $0x18] sm:$0xff]
    %v63 = vcombine.high %v46, %v46
    %v64 = vcombine.high %v47, %v47
    %v65 = vcombine.high %v48, %v48
    %v66 = vcombine.high %v49, %v49
    %vm67 = vcmask 1042432
    %vm68 = vcmask 1046532
    %vm69 = vmor %vm67, %vm68
    %v70 = vrot.slane %v46, 5
    %v71 = vrot.slane %v70, 4
    %v72 = vrot.slane %v63, 5
    %v73 = vsel %vm69, %v71, %v72
    %v74 = vrot.slane %v72, 4
    %v75 = vrot.slane %v47, 5
    %v76 = vsel %vm69, %v74, %v75
    %v77 = vrot.slane %v75, 4
    %v78 = vrot.slane %v64, 5
    %v79 = vsel %vm69, %v77, %v78
    %v80 = vrot.slane %v48, 5
    %v81 = vrot.slane %v80, 4
    %v82 = vrot.slane %v65, 5
    %v83 = vsel %vm69, %v81, %v82
    %v84 = vrot.slane %v82, 4
    %v85 = vrot.slane %v49, 5
    %v86 = vsel %vm69, %v84, %v85
    %v87 = vrot.slane %v85, 4
    %v88 = vrot.slane %v66, 5
    %v89 = vsel %vm69, %v87, %v88
    %v90 = vcombine.low %v73, %v76
    %v91 = vcombine.low %v79, %v83
    %v92 = vcombine.low %v86, %v89
    %vm93 = vcmask 261120
    %v94 = vsel %vm93, %v90, 0
    %v96 = vsel %vm93, %v91, 0
    %v98 = vsel %vm93, %v92, 0
    %100 = vmatprep.subr.mxu0 0.0
    %101 = vmatpush1.msra.mxu0 %v55
    %102 = vmatprep.subr.mxu0 0.0
    %103 = vmatpush1.msra.mxu0 %v56
    %104 = vmatprep.subr.mxu0 0.0
    %105 = vmatpush1.msra.mxu0 %v57
    %106 = vmatprep.subr.mxu0 0.0
    %107 = vmatpush1.msra.mxu0 %v58
    %108 = vmatprep.subr.mxu0 0.0
    %109 = vmatpush1.msra.mxu0 0.0
    %110 = vmatprep.subr.mxu0 0.0
    %111 = vmatpush1.msra.mxu0 0.0
    %112 = vmatprep.subr.mxu0 0.0
    %113 = vmatpush1.msra.mxu0 0.0
    %114 = vmatprep.subr.mxu0 0.0
    %115 = vmatpush1.msra.mxu0 0.0
    %116 = vmatprep.subr.mxu0 0.0
    %117 = vmatpush1.msra.mxu0 0.0
    %118 = vmatprep.subr.mxu0 0.0
    %119 = vmatpush1.msra.mxu0 0.0
    %120 = vmatprep.subr.mxu0 0.0
    %121 = vmatpush1.msra.mxu0 0.0
    %122 = vmatprep.subr.mxu0 0.0
    %123 = vmatpush1.msra.mxu0 0.0
    %124 = vmatprep.subr.mxu0 0.0
    %125 = vmatpush1.msra.mxu0 0.0
    %126 = vmatprep.subr.mxu0 0.0
    %127 = vmatpush1.msra.mxu0 0.0
    %128 = vmatprep.subr.mxu0 0.0
    %129 = vmatpush1.msra.mxu0 0.0
    %130 = vmatprep.subr.mxu0 0.0
    %131 = vmatpush1.msra.mxu0 0.0
    %132 = vmatprep.subr.mxu0 0.0
    %133 = vmatpush1.msra.mxu0 0.0
    %134 = vmatprep.subr.mxu0 0.0
    %135 = vmatpush1.msra.mxu0 0.0
    %136 = vmatprep.subr.mxu0 0.0
    %137 = vmatpush1.msra.mxu0 0.0
    %138 = vmatprep.subr.mxu0 0.0
    %139 = vmatpush1.msra.mxu0 0.0
    %140 = vmatprep.subr.mxu0 0.0
    %141 = vmatpush1.msra.mxu0 0.0
    %142 = vmatprep.subr.mxu0 0.0
    %143 = vmatpush1.msra.mxu0 0.0
    %144 = vmatprep.subr.mxu0 0.0
    %145 = vmatpush1.msra.mxu0 0.0
    %146 = vmatprep.subr.mxu0 0.0
    %147 = vmatpush1.msra.mxu0 0.0
    %148 = vmatprep.subr.mxu0 0.0
    %149 = vmatpush1.msra.mxu0 0.0
    %150 = vmatprep.subr.mxu0 0.0
    %151 = vmatpush1.msra.mxu0 0.0
    %152 = vmatprep.subr.mxu0 0.0
    %153 = vmatpush1.msra.mxu0 0.0
    %154 = vmatprep.subr.mxu0 0.0
    %155 = vmatpush1.msra.mxu0 0.0
    %156 = vmatprep.subr.mxu0 0.0
    %157 = vmatpush1.msra.mxu0 0.0
    %158 = vmatprep.subr.mxu0 0.0
    %159 = vmatpush1.msra.mxu0 0.0
    %160 = vmatprep.subr.mxu0 0.0
    %161 = vmatpush1.msra.mxu0 0.0
    %162 = vmatprep.subr.mxu0 0.0
    %163 = vmatpush1.msra.mxu0 0.0
    %164 = vmatprep.mubr.f32.mxu0 0.0
    %165 = vmatmul.mubr.f32.gmra.mrb[0].mxu0 %v94
    %v166 = vpop.f32.mrb[0].mxu0
    %v167 = vadd.f32 0.0, %v166
    %v168 = vpop.f32.mrb[0].mxu0
    %169 = vmatprep.mubr.f32.mxu0 0.0
    %170 = vmatmul.mubr.f32.gmra.mrb[0].mxu0 %v96
    %v171 = vpop.f32.mrb[0].mxu0
    %v172 = vadd.f32 0.0, %v171
    %v173 = vpop.f32.mrb[0].mxu0
    %174 = vmatprep.mubr.f32.mxu0 0.0
    %175 = vmatmul.mubr.f32.gmra.mrb[0].mxu0 %v98
    %v176 = vpop.f32.mrb[0].mxu0
    %v177 = vadd.f32 0.0, %v176
    %v178 = vpop.f32.mrb[0].mxu0
    %179 = vdwg.mxu0
    %v180 = vcombine.low %v46, %v63
    %v181 = vcombine.low %v47, %v48
    %v182 = vcombine.low %v65, %v49
    %v183 = vsel %vm93, %v180, 0
    %v185 = vsel %vm93, %v181, 0
    %v187 = vsel %vm93, %v182, 0
    %189 = vmatprep.subr.mxu0 0.0
    %190 = vmatpush1.msra.mxu0 %v50
    %191 = vmatprep.subr.mxu0 0.0
    %192 = vmatpush1.msra.mxu0 %v51
    %193 = vmatprep.subr.mxu0 0.0
    %194 = vmatpush1.msra.mxu0 %v52
    %195 = vmatprep.subr.mxu0 0.0
    %196 = vmatpush1.msra.mxu0 %v53
    %197 = vmatprep.subr.mxu0 0.0
    %198 = vmatpush1.msra.mxu0 0.0
    %199 = vmatprep.subr.mxu0 0.0
    %200 = vmatpush1.msra.mxu0 0.0
    %201 = vmatprep.subr.mxu0 0.0
    %202 = vmatpush1.msra.mxu0 0.0
    %203 = vmatprep.subr.mxu0 0.0
    %204 = vmatpush1.msra.mxu0 0.0
    %205 = vmatprep.subr.mxu0 0.0
    %206 = vmatpush1.msra.mxu0 0.0
    %207 = vmatprep.subr.mxu0 0.0
    %208 = vmatpush1.msra.mxu0 0.0
    %209 = vmatprep.subr.mxu0 0.0
    %210 = vmatpush1.msra.mxu0 0.0
    %211 = vmatprep.subr.mxu0 0.0
    %212 = vmatpush1.msra.mxu0 0.0
    %213 = vmatprep.subr.mxu0 0.0
    %214 = vmatpush1.msra.mxu0 0.0
    %215 = vmatprep.subr.mxu0 0.0
    %216 = vmatpush1.msra.mxu0 0.0
    %217 = vmatprep.subr.mxu0 0.0
    %218 = vmatpush1.msra.mxu0 0.0
    %219 = vmatprep.subr.mxu0 0.0
    %220 = vmatpush1.msra.mxu0 0.0
    %221 = vmatprep.subr.mxu0 0.0
    %222 = vmatpush1.msra.mxu0 0.0
    %223 = vmatprep.subr.mxu0 0.0
    %224 = vmatpush1.msra.mxu0 0.0
    %225 = vmatprep.subr.mxu0 0.0
    %226 = vmatpush1.msra.mxu0 0.0
    %227 = vmatprep.subr.mxu0 0.0
    %228 = vmatpush1.msra.mxu0 0.0
    %229 = vmatprep.subr.mxu0 0.0
    %230 = vmatpush1.msra.mxu0 0.0
    %231 = vmatprep.subr.mxu0 0.0
    %232 = vmatpush1.msra.mxu0 0.0
    %233 = vmatprep.subr.mxu0 0.0
    %234 = vmatpush1.msra.mxu0 0.0
    %235 = vmatprep.subr.mxu0 0.0
    %236 = vmatpush1.msra.mxu0 0.0
    %237 = vmatprep.subr.mxu0 0.0
    %238 = vmatpush1.msra.mxu0 0.0
    %239 = vmatprep.subr.mxu0 0.0
    %240 = vmatpush1.msra.mxu0 0.0
    %241 = vmatprep.subr.mxu0 0.0
    %242 = vmatpush1.msra.mxu0 0.0
    %243 = vmatprep.subr.mxu0 0.0
    %244 = vmatpush1.msra.mxu0 0.0
    %245 = vmatprep.subr.mxu0 0.0
    %246 = vmatpush1.msra.mxu0 0.0
    %247 = vmatprep.subr.mxu0 0.0
    %248 = vmatpush1.msra.mxu0 0.0
    %249 = vmatprep.subr.mxu0 0.0
    %250 = vmatpush1.msra.mxu0 0.0
    %251 = vmatprep.subr.mxu0 0.0
    %252 = vmatpush1.msra.mxu0 0.0
    %253 = vmatprep.mubr.f32.mxu0 0.0
    %254 = vmatmul.mubr.f32.gmra.mrb[0].mxu0 %v183
    %v255 = vpop.f32.mrb[0].mxu0
    %v256 = vadd.f32 %v167, %v255
    %v257 = vpop.f32.mrb[0].mxu0
    %258 = vmatprep.mubr.f32.mxu0 0.0
    %259 = vmatmul.mubr.f32.gmra.mrb[0].mxu0 %v185
    %v260 = vpop.f32.mrb[0].mxu0
    %v261 = vadd.f32 %v172, %v260
    %v262 = vpop.f32.mrb[0].mxu0
    %263 = vmatprep.mubr.f32.mxu0 0.0
    %264 = vmatmul.mubr.f32.gmra.mrb[0].mxu0 %v187
    %v265 = vpop.f32.mrb[0].mxu0
    %v266 = vadd.f32 %v177, %v265
    %v267 = vpop.f32.mrb[0].mxu0
    %268 = vdwg.mxu0
    %v272 = vcombine.high %v256, %v256
    %v273 = vcombine.high %v261, %v261
    %v274 = vcombine.high %v266, %v266
    %s278 = scalar_lea.vmem [#allocation5], 64
    %v279 = vld [vmem:[%s278] sm:$0xff]
    %v280 = vld [vmem:[%s278 + $0x8] sm:$0xff]
    %v281 = vld [vmem:[%s278 + $0x10] sm:$0xff]
    %v282 = vld [vmem:[%s278 + $0x18] sm:$0xff]
    %vm283 = vcmask 1041408
    %vm284 = vcmask 1045508
    %vm285 = vmor %vm283, %vm284
    %v286 = vrot.slane %v46, 6
    %v287 = vrot.slane %v286, 4
    %v288 = vrot.slane %v63, 6
    %v289 = vsel %vm285, %v287, %v288
    %v290 = vrot.slane %v288, 4
    %v291 = vrot.slane %v47, 6
    %v292 = vsel %vm285, %v290, %v291
    %v293 = vrot.slane %v291, 4
    %v294 = vrot.slane %v64, 6
    %v295 = vsel %vm285, %v293, %v294
    %v296 = vrot.slane %v48, 6
    %v297 = vrot.slane %v296, 4
    %v298 = vrot.slane %v65, 6
    %v299 = vsel %vm285, %v297, %v298
    %v300 = vrot.slane %v298, 4
    %v301 = vrot.slane %v49, 6
    %v302 = vsel %vm285, %v300, %v301
    %v303 = vrot.slane %v301, 4
    %v304 = vrot.slane %v66, 6
    %v305 = vsel %vm285, %v303, %v304
    %v306 = vcombine.low %v289, %v292
    %v307 = vcombine.low %v295, %v299
    %v308 = vcombine.low %v302, %v305
    %v309 = vsel %vm93, %v306, 0
    %v311 = vsel %vm93, %v307, 0
    %v313 = vsel %vm93, %v308, 0
    %315 = vmatprep.subr.mxu0 0.0
    %316 = vmatpush1.msra.mxu0 %v279
    %317 = vmatprep.subr.mxu0 0.0
    %318 = vmatpush1.msra.mxu0 %v280
    %319 = vmatprep.subr.mxu0 0.0
    %320 = vmatpush1.msra.mxu0 %v281
    %321 = vmatprep.subr.mxu0 0.0
    %322 = vmatpush1.msra.mxu0 %v282
    %323 = vmatprep.subr.mxu0 0.0
    %324 = vmatpush1.msra.mxu0 0.0
    %325 = vmatprep.subr.mxu0 0.0
    %326 = vmatpush1.msra.mxu0 0.0
    %327 = vmatprep.subr.mxu0 0.0
    %328 = vmatpush1.msra.mxu0 0.0
    %329 = vmatprep.subr.mxu0 0.0
    %330 = vmatpush1.msra.mxu0 0.0
    %331 = vmatprep.subr.mxu0 0.0
    %332 = vmatpush1.msra.mxu0 0.0
    %333 = vmatprep.subr.mxu0 0.0
    %334 = vmatpush1.msra.mxu0 0.0
    %335 = vmatprep.subr.mxu0 0.0
    %336 = vmatpush1.msra.mxu0 0.0
    %337 = vmatprep.subr.mxu0 0.0
    %338 = vmatpush1.msra.mxu0 0.0
    %339 = vmatprep.subr.mxu0 0.0
    %340 = vmatpush1.msra.mxu0 0.0
    %341 = vmatprep.subr.mxu0 0.0
    %342 = vmatpush1.msra.mxu0 0.0
    %343 = vmatprep.subr.mxu0 0.0
    %344 = vmatpush1.msra.mxu0 0.0
    %345 = vmatprep.subr.mxu0 0.0
    %346 = vmatpush1.msra.mxu0 0.0
    %347 = vmatprep.subr.mxu0 0.0
    %348 = vmatpush1.msra.mxu0 0.0
    %349 = vmatprep.subr.mxu0 0.0
    %350 = vmatpush1.msra.mxu0 0.0
    %351 = vmatprep.subr.mxu0 0.0
    %352 = vmatpush1.msra.mxu0 0.0
    %353 = vmatprep.subr.mxu0 0.0
    %354 = vmatpush1.msra.mxu0 0.0
    %355 = vmatprep.subr.mxu0 0.0
    %356 = vmatpush1.msra.mxu0 0.0
    %357 = vmatprep.subr.mxu0 0.0
    %358 = vmatpush1.msra.mxu0 0.0
    %359 = vmatprep.subr.mxu0 0.0
    %360 = vmatpush1.msra.mxu0 0.0
    %361 = vmatprep.subr.mxu0 0.0
    %362 = vmatpush1.msra.mxu0 0.0
    %363 = vmatprep.subr.mxu0 0.0
    %364 = vmatpush1.msra.mxu0 0.0
    %365 = vmatprep.subr.mxu0 0.0
    %366 = vmatpush1.msra.mxu0 0.0
    %367 = vmatprep.subr.mxu0 0.0
    %368 = vmatpush1.msra.mxu0 0.0
    %369 = vmatprep.subr.mxu0 0.0
    %370 = vmatpush1.msra.mxu0 0.0
    %371 = vmatprep.subr.mxu0 0.0
    %372 = vmatpush1.msra.mxu0 0.0
    %373 = vmatprep.subr.mxu0 0.0
    %374 = vmatpush1.msra.mxu0 0.0
    %375 = vmatprep.subr.mxu0 0.0
    %376 = vmatpush1.msra.mxu0 0.0
    %377 = vmatprep.subr.mxu0 0.0
    %378 = vmatpush1.msra.mxu0 0.0
    %379 = vmatprep.mubr.f32.mxu0 0.0
    %380 = vmatmul.mubr.f32.gmra.mrb[0].mxu0 %v309
    %v381 = vpop.f32.mrb[0].mxu0
    %v382 = vadd.f32 0.0, %v381
    %v383 = vpop.f32.mrb[0].mxu0
    %384 = vmatprep.mubr.f32.mxu0 0.0
    %385 = vmatmul.mubr.f32.gmra.mrb[0].mxu0 %v311
    %v386 = vpop.f32.mrb[0].mxu0
    %v387 = vadd.f32 0.0, %v386
    %v388 = vpop.f32.mrb[0].mxu0
    %389 = vmatprep.mubr.f32.mxu0 0.0
    %390 = vmatmul.mubr.f32.gmra.mrb[0].mxu0 %v313
    %v391 = vpop.f32.mrb[0].mxu0
    %v392 = vadd.f32 0.0, %v391
    %v393 = vpop.f32.mrb[0].mxu0
    %394 = vdwg.mxu0
    %v398 = vcombine.high %v382, %v382
    %v399 = vcombine.high %v387, %v387
    %v400 = vcombine.high %v392, %v392
    %v404 = vadd.f32 %v256, %v382
    %v405 = vadd.f32 %v272, %v398
    %v406 = vadd.f32 %v261, %v387
    %v407 = vadd.f32 %v273, %v399
    %v408 = vadd.f32 %v266, %v392
    %v409 = vadd.f32 %v274, %v400
    %s410 = scalar_lea.vmem [#allocation5], 96
    %v411 = vld [vmem:[%s410] sm:$0xff]
    %v412 = vld [vmem:[%s410 + $0x8] sm:$0xff]
    %v413 = vld [vmem:[%s410 + $0x10] sm:$0xff]
    %v414 = vld [vmem:[%s410 + $0x18] sm:$0xff]
    %vm415 = vcmask 1040384
    %vm416 = vcmask 1044484
    %vm417 = vmor %vm415, %vm416
    %v418 = vrot.slane %v46, 7
    %v419 = vrot.slane %v418, 4
    %v420 = vrot.slane %v63, 7
    %v421 = vsel %vm417, %v419, %v420
    %v422 = vrot.slane %v420, 4
    %v423 = vrot.slane %v47, 7
    %v424 = vsel %vm417, %v422, %v423
    %v425 = vrot.slane %v423, 4
    %v426 = vrot.slane %v64, 7
    %v427 = vsel %vm417, %v425, %v426
    %v428 = vrot.slane %v48, 7
    %v429 = vrot.slane %v428, 4
    %v430 = vrot.slane %v65, 7
    %v431 = vsel %vm417, %v429, %v430
    %v432 = vrot.slane %v430, 4
    %v433 = vrot.slane %v49, 7
    %v434 = vsel %vm417, %v432, %v433
    %v435 = vrot.slane %v433, 4
    %v436 = vrot.slane %v66, 7
    %v437 = vsel %vm417, %v435, %v436
    %v438 = vcombine.low %v421, %v424
    %v439 = vcombine.low %v427, %v431
    %v440 = vcombine.low %v434, %v437
    %v441 = vsel %vm93, %v438, 0
    %v443 = vsel %vm93, %v439, 0
    %v445 = vsel %vm93, %v440, 0
    %447 = vmatprep.subr.mxu0 0.0
    %448 = vmatpush1.msra.mxu0 %v411
    %449 = vmatprep.subr.mxu0 0.0
    %450 = vmatpush1.msra.mxu0 %v412
    %451 = vmatprep.subr.mxu0 0.0
    %452 = vmatpush1.msra.mxu0 %v413
    %453 = vmatprep.subr.mxu0 0.0
    %454 = vmatpush1.msra.mxu0 %v414
    %455 = vmatprep.subr.mxu0 0.0
    %456 = vmatpush1.msra.mxu0 0.0
    %457 = vmatprep.subr.mxu0 0.0
    %458 = vmatpush1.msra.mxu0 0.0
    %459 = vmatprep.subr.mxu0 0.0
    %460 = vmatpush1.msra.mxu0 0.0
    %461 = vmatprep.subr.mxu0 0.0
    %462 = vmatpush1.msra.mxu0 0.0
    %463 = vmatprep.subr.mxu0 0.0
    %464 = vmatpush1.msra.mxu0 0.0
    %465 = vmatprep.subr.mxu0 0.0
    %466 = vmatpush1.msra.mxu0 0.0
    %467 = vmatprep.subr.mxu0 0.0
    %468 = vmatpush1.msra.mxu0 0.0
    %469 = vmatprep.subr.mxu0 0.0
    %470 = vmatpush1.msra.mxu0 0.0
    %471 = vmatprep.subr.mxu0 0.0
    %472 = vmatpush1.msra.mxu0 0.0
    %473 = vmatprep.subr.mxu0 0.0
    %474 = vmatpush1.msra.mxu0 0.0
    %475 = vmatprep.subr.mxu0 0.0
    %476 = vmatpush1.msra.mxu0 0.0
    %477 = vmatprep.subr.mxu0 0.0
    %478 = vmatpush1.msra.mxu0 0.0
    %479 = vmatprep.subr.mxu0 0.0
    %480 = vmatpush1.msra.mxu0 0.0
    %481 = vmatprep.subr.mxu0 0.0
    %482 = vmatpush1.msra.mxu0 0.0
    %483 = vmatprep.subr.mxu0 0.0
    %484 = vmatpush1.msra.mxu0 0.0
    %485 = vmatprep.subr.mxu0 0.0
    %486 = vmatpush1.msra.mxu0 0.0
    %487 = vmatprep.subr.mxu0 0.0
    %488 = vmatpush1.msra.mxu0 0.0
    %489 = vmatprep.subr.mxu0 0.0
    %490 = vmatpush1.msra.mxu0 0.0
    %491 = vmatprep.subr.mxu0 0.0
    %492 = vmatpush1.msra.mxu0 0.0
    %493 = vmatprep.subr.mxu0 0.0
    %494 = vmatpush1.msra.mxu0 0.0
    %495 = vmatprep.subr.mxu0 0.0
    %496 = vmatpush1.msra.mxu0 0.0
    %497 = vmatprep.subr.mxu0 0.0
    %498 = vmatpush1.msra.mxu0 0.0
    %499 = vmatprep.subr.mxu0 0.0
    %500 = vmatpush1.msra.mxu0 0.0
    %501 = vmatprep.subr.mxu0 0.0
    %502 = vmatpush1.msra.mxu0 0.0
    %503 = vmatprep.subr.mxu0 0.0
    %504 = vmatpush1.msra.mxu0 0.0
    %505 = vmatprep.subr.mxu0 0.0
    %506 = vmatpush1.msra.mxu0 0.0
    %507 = vmatprep.subr.mxu0 0.0
    %508 = vmatpush1.msra.mxu0 0.0
    %509 = vmatprep.subr.mxu0 0.0
    %510 = vmatpush1.msra.mxu0 0.0
    %511 = vmatprep.mubr.f32.mxu0 0.0
    %512 = vmatmul.mubr.f32.gmra.mrb[0].mxu0 %v441
    %v513 = vpop.f32.mrb[0].mxu0
    %v514 = vadd.f32 0.0, %v513
    %v515 = vpop.f32.mrb[0].mxu0
    %516 = vmatprep.mubr.f32.mxu0 0.0
    %517 = vmatmul.mubr.f32.gmra.mrb[0].mxu0 %v443
    %v518 = vpop.f32.mrb[0].mxu0
    %v519 = vadd.f32 0.0, %v518
    %v520 = vpop.f32.mrb[0].mxu0
    %521 = vmatprep.mubr.f32.mxu0 0.0
    %522 = vmatmul.mubr.f32.gmra.mrb[0].mxu0 %v445
    %v523 = vpop.f32.mrb[0].mxu0
    %v524 = vadd.f32 0.0, %v523
    %v525 = vpop.f32.mrb[0].mxu0
    %526 = vdwg.mxu0
    %v530 = vcombine.high %v514, %v514
    %v531 = vcombine.high %v519, %v519
    %v532 = vcombine.high %v524, %v524
    %v536 = vadd.f32 %v404, %v514
    %v537 = vadd.f32 %v405, %v530
    %v538 = vadd.f32 %v406, %v519
    %v539 = vadd.f32 %v407, %v531
    %v540 = vadd.f32 %v408, %v524
    %v541 = vadd.f32 %v409, %v532
    %s542 = scalar_lea.vmem [#allocation5], 128
    %v543 = vld [vmem:[%s542] sm:$0xff]
    %v544 = vld [vmem:[%s542 + $0x8] sm:$0xff]
    %v545 = vld [vmem:[%s542 + $0x10] sm:$0xff]
    %v546 = vld [vmem:[%s542 + $0x18] sm:$0xff]
    %v547 = vcombine.low %v63, %v47
    %v548 = vcombine.low %v64, %v65
    %v549 = vcombine.low %v49, %v66
    %v550 = vsel %vm93, %v547, 0
    %v552 = vsel %vm93, %v548, 0
    %v554 = vsel %vm93, %v549, 0
    %556 = vmatprep.subr.mxu0 0.0
    %557 = vmatpush1.msra.mxu0 %v543
    %558 = vmatprep.subr.mxu0 0.0
    %559 = vmatpush1.msra.mxu0 %v544
    %560 = vmatprep.subr.mxu0 0.0
    %561 = vmatpush1.msra.mxu0 %v545
    %562 = vmatprep.subr.mxu0 0.0
    %563 = vmatpush1.msra.mxu0 %v546
    %564 = vmatprep.subr.mxu0 0.0
    %565 = vmatpush1.msra.mxu0 0.0
    %566 = vmatprep.subr.mxu0 0.0
    %567 = vmatpush1.msra.mxu0 0.0
    %568 = vmatprep.subr.mxu0 0.0
    %569 = vmatpush1.msra.mxu0 0.0
    %570 = vmatprep.subr.mxu0 0.0
    %571 = vmatpush1.msra.mxu0 0.0
    %572 = vmatprep.subr.mxu0 0.0
    %573 = vmatpush1.msra.mxu0 0.0
    %574 = vmatprep.subr.mxu0 0.0
    %575 = vmatpush1.msra.mxu0 0.0
    %576 = vmatprep.subr.mxu0 0.0
    %577 = vmatpush1.msra.mxu0 0.0
    %578 = vmatprep.subr.mxu0 0.0
    %579 = vmatpush1.msra.mxu0 0.0
    %580 = vmatprep.subr.mxu0 0.0
    %581 = vmatpush1.msra.mxu0 0.0
    %582 = vmatprep.subr.mxu0 0.0
    %583 = vmatpush1.msra.mxu0 0.0
    %584 = vmatprep.subr.mxu0 0.0
    %585 = vmatpush1.msra.mxu0 0.0
    %586 = vmatprep.subr.mxu0 0.0
    %587 = vmatpush1.msra.mxu0 0.0
    %588 = vmatprep.subr.mxu0 0.0
    %589 = vmatpush1.msra.mxu0 0.0
    %590 = vmatprep.subr.mxu0 0.0
    %591 = vmatpush1.msra.mxu0 0.0
    %592 = vmatprep.subr.mxu0 0.0
    %593 = vmatpush1.msra.mxu0 0.0
    %594 = vmatprep.subr.mxu0 0.0
    %595 = vmatpush1.msra.mxu0 0.0
    %596 = vmatprep.subr.mxu0 0.0
    %597 = vmatpush1.msra.mxu0 0.0
    %598 = vmatprep.subr.mxu0 0.0
    %599 = vmatpush1.msra.mxu0 0.0
    %600 = vmatprep.subr.mxu0 0.0
    %601 = vmatpush1.msra.mxu0 0.0
    %602 = vmatprep.subr.mxu0 0.0
    %603 = vmatpush1.msra.mxu0 0.0
    %604 = vmatprep.subr.mxu0 0.0
    %605 = vmatpush1.msra.mxu0 0.0
    %606 = vmatprep.subr.mxu0 0.0
    %607 = vmatpush1.msra.mxu0 0.0
    %608 = vmatprep.subr.mxu0 0.0
    %609 = vmatpush1.msra.mxu0 0.0
    %610 = vmatprep.subr.mxu0 0.0
    %611 = vmatpush1.msra.mxu0 0.0
    %612 = vmatprep.subr.mxu0 0.0
    %613 = vmatpush1.msra.mxu0 0.0
    %614 = vmatprep.subr.mxu0 0.0
    %615 = vmatpush1.msra.mxu0 0.0
    %616 = vmatprep.subr.mxu0 0.0
    %617 = vmatpush1.msra.mxu0 0.0
    %618 = vmatprep.subr.mxu0 0.0
    %619 = vmatpush1.msra.mxu0 0.0
    %620 = vmatprep.mubr.f32.mxu0 0.0
    %621 = vmatmul.mubr.f32.gmra.mrb[0].mxu0 %v550
    %v622 = vpop.f32.mrb[0].mxu0
    %v623 = vadd.f32 0.0, %v622
    %v624 = vpop.f32.mrb[0].mxu0
    %625 = vmatprep.mubr.f32.mxu0 0.0
    %626 = vmatmul.mubr.f32.gmra.mrb[0].mxu0 %v552
    %v627 = vpop.f32.mrb[0].mxu0
    %v628 = vadd.f32 0.0, %v627
    %v629 = vpop.f32.mrb[0].mxu0
    %630 = vmatprep.mubr.f32.mxu0 0.0
    %631 = vmatmul.mubr.f32.gmra.mrb[0].mxu0 %v554
    %v632 = vpop.f32.mrb[0].mxu0
    %v633 = vadd.f32 0.0, %v632
    %v634 = vpop.f32.mrb[0].mxu0
    %635 = vdwg.mxu0
    %v639 = vcombine.high %v623, %v623
    %v640 = vcombine.high %v628, %v628
    %v641 = vcombine.high %v633, %v633
    %v645 = vadd.f32 %v536, %v623
    %v646 = vadd.f32 %v537, %v639
    %v647 = vadd.f32 %v538, %v628
    %v648 = vadd.f32 %v539, %v640
    %v649 = vadd.f32 %v540, %v633
    %v650 = vadd.f32 %v541, %v641
    %v655 = vcombine.low %v645, %v646
    %v656 = vcombine.low %v648, %v649
    %vm659 = vcmask 1043456
    %v660 = vsel %vm659, %v647, -inf
    %v661 = vmax.f32 %v655, %v660
    %v662 = vrot.slane %v661, 4
    %v663 = vmax.f32 %v661, %v662
    %v664 = vrot.slane %v663, 2
    %v665 = vmax.f32 %v663, %v664
    %v666 = vrot.slane %v665, 1
    %v667 = vmax.f32 %v665, %v666
    %v668 = vsel %vm659, %v650, -inf
    %v669 = vmax.f32 %v656, %v668
    %v670 = vrot.slane %v669, 4
    %v671 = vmax.f32 %v669, %v670
    %v672 = vrot.slane %v671, 2
    %v673 = vmax.f32 %v671, %v672
    %v674 = vrot.slane %v673, 1
    %v675 = vmax.f32 %v673, %v674
    %v676 = vmax.f32 %v667, -1e+30
    %v677 = vmax.f32 %v675, -1e+30
    %v678 = vld [vmem:[#allocation2 + $0xc] sm:$0x1]
    %v679 = vld [vmem:[#allocation2 + $0x1c] sm:$0x1]
    %v680 = vld [vmem:[#allocation2 + $0xd] sm:$0x1]
    %v681 = vld [vmem:[#allocation2 + $0x1d] sm:$0x1]
    %v684 = vrot.slane %v681, 7
    %vm685 = vcmask 1041409
    %v686 = vsel %vm685, %v684, %v680
    %v687 = vsel %vm93, %v686, 0
    %689 = vmatprep.subr.mxu0 0.0
    %690 = vmatpush1.msra.mxu0 %v55
    %691 = vmatprep.subr.mxu0 0.0
    %692 = vmatpush1.msra.mxu0 %v56
    %693 = vmatprep.subr.mxu0 0.0
    %694 = vmatpush1.msra.mxu0 %v57
    %695 = vmatprep.subr.mxu0 0.0
    %696 = vmatpush1.msra.mxu0 %v58
    %697 = vmatprep.subr.mxu0 0.0
    %698 = vmatpush1.msra.mxu0 0.0
    %699 = vmatprep.subr.mxu0 0.0
    %700 = vmatpush1.msra.mxu0 0.0
    %701 = vmatprep.subr.mxu0 0.0
    %702 = vmatpush1.msra.mxu0 0.0
    %703 = vmatprep.subr.mxu0 0.0
    %704 = vmatpush1.msra.mxu0 0.0
    %705 = vmatprep.subr.mxu0 0.0
    %706 = vmatpush1.msra.mxu0 0.0
    %707 = vmatprep.subr.mxu0 0.0
    %708 = vmatpush1.msra.mxu0 0.0
    %709 = vmatprep.subr.mxu0 0.0
    %710 = vmatpush1.msra.mxu0 0.0
    %711 = vmatprep.subr.mxu0 0.0
    %712 = vmatpush1.msra.mxu0 0.0
    %713 = vmatprep.subr.mxu0 0.0
    %714 = vmatpush1.msra.mxu0 0.0
    %715 = vmatprep.subr.mxu0 0.0
    %716 = vmatpush1.msra.mxu0 0.0
    %717 = vmatprep.subr.mxu0 0.0
    %718 = vmatpush1.msra.mxu0 0.0
    %719 = vmatprep.subr.mxu0 0.0
    %720 = vmatpush1.msra.mxu0 0.0
    %721 = vmatprep.subr.mxu0 0.0
    %722 = vmatpush1.msra.mxu0 0.0
    %723 = vmatprep.subr.mxu0 0.0
    %724 = vmatpush1.msra.mxu0 0.0
    %725 = vmatprep.subr.mxu0 0.0
    %726 = vmatpush1.msra.mxu0 0.0
    %727 = vmatprep.subr.mxu0 0.0
    %728 = vmatpush1.msra.mxu0 0.0
    %729 = vmatprep.subr.mxu0 0.0
    %730 = vmatpush1.msra.mxu0 0.0
    %731 = vmatprep.subr.mxu0 0.0
    %732 = vmatpush1.msra.mxu0 0.0
    %733 = vmatprep.subr.mxu0 0.0
    %734 = vmatpush1.msra.mxu0 0.0
    %735 = vmatprep.subr.mxu0 0.0
    %736 = vmatpush1.msra.mxu0 0.0
    %737 = vmatprep.subr.mxu0 0.0
    %738 = vmatpush1.msra.mxu0 0.0
    %739 = vmatprep.subr.mxu0 0.0
    %740 = vmatpush1.msra.mxu0 0.0
    %741 = vmatprep.subr.mxu0 0.0
    %742 = vmatpush1.msra.mxu0 0.0
    %743 = vmatprep.subr.mxu0 0.0
    %744 = vmatpush1.msra.mxu0 0.0
    %745 = vmatprep.subr.mxu0 0.0
    %746 = vmatpush1.msra.mxu0 0.0
    %747 = vmatprep.subr.mxu0 0.0
    %748 = vmatpush1.msra.mxu0 0.0
    %749 = vmatprep.subr.mxu0 0.0
    %750 = vmatpush1.msra.mxu0 0.0
    %751 = vmatprep.subr.mxu0 0.0
    %752 = vmatpush1.msra.mxu0 0.0
    %753 = vmatprep.mubr.f32.mxu0 0.0
    %754 = vmatmul.mubr.f32.gmra.mrb[0].mxu0 %v687
    %v755 = vpop.f32.mrb[0].mxu0
    %v756 = vadd.f32 0.0, %v755
    %v757 = vpop.f32.mrb[0].mxu0
    %758 = vdwg.mxu0
    %v761 = vrot.slane %v679, 7
    %v762 = vsel %vm685, %v761, %v678
    %v763 = vsel %vm93, %v762, 0
    %765 = vmatprep.subr.mxu0 0.0
    %766 = vmatpush1.msra.mxu0 %v50
    %767 = vmatprep.subr.mxu0 0.0
    %768 = vmatpush1.msra.mxu0 %v51
    %769 = vmatprep.subr.mxu0 0.0
    %770 = vmatpush1.msra.mxu0 %v52
    %771 = vmatprep.subr.mxu0 0.0
    %772 = vmatpush1.msra.mxu0 %v53
    %773 = vmatprep.subr.mxu0 0.0
    %774 = vmatpush1.msra.mxu0 0.0
    %775 = vmatprep.subr.mxu0 0.0
    %776 = vmatpush1.msra.mxu0 0.0
    %777 = vmatprep.subr.mxu0 0.0
    %778 = vmatpush1.msra.mxu0 0.0
    %779 = vmatprep.subr.mxu0 0.0
    %780 = vmatpush1.msra.mxu0 0.0
    %781 = vmatprep.subr.mxu0 0.0
    %782 = vmatpush1.msra.mxu0 0.0
    %783 = vmatprep.subr.mxu0 0.0
    %784 = vmatpush1.msra.mxu0 0.0
    %785 = vmatprep.subr.mxu0 0.0
    %786 = vmatpush1.msra.mxu0 0.0
    %787 = vmatprep.subr.mxu0 0.0
    %788 = vmatpush1.msra.mxu0 0.0
    %789 = vmatprep.subr.mxu0 0.0
    %790 = vmatpush1.msra.mxu0 0.0
    %791 = vmatprep.subr.mxu0 0.0
    %792 = vmatpush1.msra.mxu0 0.0
    %793 = vmatprep.subr.mxu0 0.0
    %794 = vmatpush1.msra.mxu0 0.0
    %795 = vmatprep.subr.mxu0 0.0
    %796 = vmatpush1.msra.mxu0 0.0
    %797 = vmatprep.subr.mxu0 0.0
    %798 = vmatpush1.msra.mxu0 0.0
    %799 = vmatprep.subr.mxu0 0.0
    %800 = vmatpush1.msra.mxu0 0.0
    %801 = vmatprep.subr.mxu0 0.0
    %802 = vmatpush1.msra.mxu0 0.0
    %803 = vmatprep.subr.mxu0 0.0
    %804 = vmatpush1.msra.mxu0 0.0
    %805 = vmatprep.subr.mxu0 0.0
    %806 = vmatpush1.msra.mxu0 0.0
    %807 = vmatprep.subr.mxu0 0.0
    %808 = vmatpush1.msra.mxu0 0.0
    %809 = vmatprep.subr.mxu0 0.0
    %810 = vmatpush1.msra.mxu0 0.0
    %811 = vmatprep.subr.mxu0 0.0
    %812 = vmatpush1.msra.mxu0 0.0
    %813 = vmatprep.subr.mxu0 0.0
    %814 = vmatpush1.msra.mxu0 0.0
    %815 = vmatprep.subr.mxu0 0.0
    %816 = vmatpush1.msra.mxu0 0.0
    %817 = vmatprep.subr.mxu0 0.0
    %818 = vmatpush1.msra.mxu0 0.0
    %819 = vmatprep.subr.mxu0 0.0
    %820 = vmatpush1.msra.mxu0 0.0
    %821 = vmatprep.subr.mxu0 0.0
    %822 = vmatpush1.msra.mxu0 0.0
    %823 = vmatprep.subr.mxu0 0.0
    %824 = vmatpush1.msra.mxu0 0.0
    %825 = vmatprep.subr.mxu0 0.0
    %826 = vmatpush1.msra.mxu0 0.0
    %827 = vmatprep.subr.mxu0 0.0
    %828 = vmatpush1.msra.mxu0 0.0
    %829 = vmatprep.mubr.f32.mxu0 0.0
    %830 = vmatmul.mubr.f32.gmra.mrb[0].mxu0 %v763
    %v831 = vpop.f32.mrb[0].mxu0
    %v832 = vadd.f32 %v756, %v831
    %v833 = vpop.f32.mrb[0].mxu0
    %834 = vdwg.mxu0
    %v837 = vunpack.c.l.s4 1966171168
    %v838 = vunpack.c.0.s8 %v837
    %v839 = vlaneseq
    %v840 = vshrl.u32 %v839, 7
    %v841 = vsub.s32 %v838, %v840
    %v842 = vrot.slane %v832, %v841
    %v843 = vcombine.high %v842, %v842
    %v845 = vunpack.c.l.s4 1966171168
    %v846 = vunpack.c.0.s8 %v845
    %v847 = vlaneseq
    %v848 = vshrl.u32 %v847, 7
    %v849 = vsub.s32 %v846, %v848
    %v850 = vrot.slane %v842, %v849
    %v852 = vunpack.c.l.s4 1966171168
    %v853 = vunpack.c.0.s8 %v852
    %v854 = vlaneseq
    %v855 = vshrl.u32 %v854, 7
    %v856 = vsub.s32 %v853, %v855
    %v857 = vrot.slane %v843, %v856
    %v860 = vld [vmem:[#allocation2 + $0xe] sm:$0x1]
    %v861 = vld [vmem:[#allocation2 + $0x1e] sm:$0x1]
    %v864 = vrot.slane %v861, 7
    %v865 = vsel %vm685, %v864, %v860
    %v866 = vsel %vm93, %v865, 0
    %868 = vmatprep.subr.mxu0 0.0
    %869 = vmatpush1.msra.mxu0 %v279
    %870 = vmatprep.subr.mxu0 0.0
    %871 = vmatpush1.msra.mxu0 %v280
    %872 = vmatprep.subr.mxu0 0.0
    %873 = vmatpush1.msra.mxu0 %v281
    %874 = vmatprep.subr.mxu0 0.0
    %875 = vmatpush1.msra.mxu0 %v282
    %876 = vmatprep.subr.mxu0 0.0
    %877 = vmatpush1.msra.mxu0 0.0
    %878 = vmatprep.subr.mxu0 0.0
    %879 = vmatpush1.msra.mxu0 0.0
    %880 = vmatprep.subr.mxu0 0.0
    %881 = vmatpush1.msra.mxu0 0.0
    %882 = vmatprep.subr.mxu0 0.0
    %883 = vmatpush1.msra.mxu0 0.0
    %884 = vmatprep.subr.mxu0 0.0
    %885 = vmatpush1.msra.mxu0 0.0
    %886 = vmatprep.subr.mxu0 0.0
    %887 = vmatpush1.msra.mxu0 0.0
    %888 = vmatprep.subr.mxu0 0.0
    %889 = vmatpush1.msra.mxu0 0.0
    %890 = vmatprep.subr.mxu0 0.0
    %891 = vmatpush1.msra.mxu0 0.0
    %892 = vmatprep.subr.mxu0 0.0
    %893 = vmatpush1.msra.mxu0 0.0
    %894 = vmatprep.subr.mxu0 0.0
    %895 = vmatpush1.msra.mxu0 0.0
    %896 = vmatprep.subr.mxu0 0.0
    %897 = vmatpush1.msra.mxu0 0.0
    %898 = vmatprep.subr.mxu0 0.0
    %899 = vmatpush1.msra.mxu0 0.0
    %900 = vmatprep.subr.mxu0 0.0
    %901 = vmatpush1.msra.mxu0 0.0
    %902 = vmatprep.subr.mxu0 0.0
    %903 = vmatpush1.msra.mxu0 0.0
    %904 = vmatprep.subr.mxu0 0.0
    %905 = vmatpush1.msra.mxu0 0.0
    %906 = vmatprep.subr.mxu0 0.0
    %907 = vmatpush1.msra.mxu0 0.0
    %908 = vmatprep.subr.mxu0 0.0
    %909 = vmatpush1.msra.mxu0 0.0
    %910 = vmatprep.subr.mxu0 0.0
    %911 = vmatpush1.msra.mxu0 0.0
    %912 = vmatprep.subr.mxu0 0.0
    %913 = vmatpush1.msra.mxu0 0.0
    %914 = vmatprep.subr.mxu0 0.0
    %915 = vmatpush1.msra.mxu0 0.0
    %916 = vmatprep.subr.mxu0 0.0
    %917 = vmatpush1.msra.mxu0 0.0
    %918 = vmatprep.subr.mxu0 0.0
    %919 = vmatpush1.msra.mxu0 0.0
    %920 = vmatprep.subr.mxu0 0.0
    %921 = vmatpush1.msra.mxu0 0.0
    %922 = vmatprep.subr.mxu0 0.0
    %923 = vmatpush1.msra.mxu0 0.0
    %924 = vmatprep.subr.mxu0 0.0
    %925 = vmatpush1.msra.mxu0 0.0
    %926 = vmatprep.subr.mxu0 0.0
    %927 = vmatpush1.msra.mxu0 0.0
    %928 = vmatprep.subr.mxu0 0.0
    %929 = vmatpush1.msra.mxu0 0.0
    %930 = vmatprep.subr.mxu0 0.0
    %931 = vmatpush1.msra.mxu0 0.0
    %932 = vmatprep.mubr.f32.mxu0 0.0
    %933 = vmatmul.mubr.f32.gmra.mrb[0].mxu0 %v866
    %v934 = vpop.f32.mrb[0].mxu0
    %v935 = vadd.f32 0.0, %v934
    %v936 = vpop.f32.mrb[0].mxu0
    %937 = vdwg.mxu0
    %v940 = vunpack.c.l.s4 1966171168
    %v941 = vunpack.c.0.s8 %v940
    %v942 = vlaneseq
    %v943 = vshrl.u32 %v942, 7
    %v944 = vsub.s32 %v941, %v943
    %v945 = vrot.slane %v935, %v944
    %v946 = vcombine.high %v945, %v945
    %v948 = vunpack.c.l.s4 1966171168
    %v949 = vunpack.c.0.s8 %v948
    %v950 = vlaneseq
    %v951 = vshrl.u32 %v950, 7
    %v952 = vsub.s32 %v949, %v951
    %v953 = vrot.slane %v945, %v952
    %v955 = vunpack.c.l.s4 1966171168
    %v956 = vunpack.c.0.s8 %v955
    %v957 = vlaneseq
    %v958 = vshrl.u32 %v957, 7
    %v959 = vsub.s32 %v956, %v958
    %v960 = vrot.slane %v946, %v959
    %v963 = vadd.f32 %v850, %v953
    %v964 = vadd.f32 %v857, %v960
    %v965 = vld [vmem:[#allocation2 + $0xf] sm:$0x1]
    %v966 = vld [vmem:[#allocation2 + $0x1f] sm:$0x1]
    %v969 = vrot.slane %v966, 7
    %v970 = vsel %vm685, %v969, %v965
    %v971 = vsel %vm93, %v970, 0
    %973 = vmatprep.subr.mxu0 0.0
    %974 = vmatpush1.msra.mxu0 %v411
    %975 = vmatprep.subr.mxu0 0.0
    %976 = vmatpush1.msra.mxu0 %v412
    %977 = vmatprep.subr.mxu0 0.0
    %978 = vmatpush1.msra.mxu0 %v413
    %979 = vmatprep.subr.mxu0 0.0
    %980 = vmatpush1.msra.mxu0 %v414
    %981 = vmatprep.subr.mxu0 0.0
    %982 = vmatpush1.msra.mxu0 0.0
    %983 = vmatprep.subr.mxu0 0.0
    %984 = vmatpush1.msra.mxu0 0.0
    %985 = vmatprep.subr.mxu0 0.0
    %986 = vmatpush1.msra.mxu0 0.0
    %987 = vmatprep.subr.mxu0 0.0
    %988 = vmatpush1.msra.mxu0 0.0
    %989 = vmatprep.subr.mxu0 0.0
    %990 = vmatpush1.msra.mxu0 0.0
    %991 = vmatprep.subr.mxu0 0.0
    %992 = vmatpush1.msra.mxu0 0.0
    %993 = vmatprep.subr.mxu0 0.0
    %994 = vmatpush1.msra.mxu0 0.0
    %995 = vmatprep.subr.mxu0 0.0
    %996 = vmatpush1.msra.mxu0 0.0
    %997 = vmatprep.subr.mxu0 0.0
    %998 = vmatpush1.msra.mxu0 0.0
    %999 = vmatprep.subr.mxu0 0.0
    %1000 = vmatpush1.msra.mxu0 0.0
    %1001 = vmatprep.subr.mxu0 0.0
    %1002 = vmatpush1.msra.mxu0 0.0
    %1003 = vmatprep.subr.mxu0 0.0
    %1004 = vmatpush1.msra.mxu0 0.0
    %1005 = vmatprep.subr.mxu0 0.0
    %1006 = vmatpush1.msra.mxu0 0.0
    %1007 = vmatprep.subr.mxu0 0.0
    %1008 = vmatpush1.msra.mxu0 0.0
    %1009 = vmatprep.subr.mxu0 0.0
    %1010 = vmatpush1.msra.mxu0 0.0
    %1011 = vmatprep.subr.mxu0 0.0
    %1012 = vmatpush1.msra.mxu0 0.0
    %1013 = vmatprep.subr.mxu0 0.0
    %1014 = vmatpush1.msra.mxu0 0.0
    %1015 = vmatprep.subr.mxu0 0.0
    %1016 = vmatpush1.msra.mxu0 0.0
    %1017 = vmatprep.subr.mxu0 0.0
    %1018 = vmatpush1.msra.mxu0 0.0
    %1019 = vmatprep.subr.mxu0 0.0
    %1020 = vmatpush1.msra.mxu0 0.0
    %1021 = vmatprep.subr.mxu0 0.0
    %1022 = vmatpush1.msra.mxu0 0.0
    %1023 = vmatprep.subr.mxu0 0.0
    %1024 = vmatpush1.msra.mxu0 0.0
    %1025 = vmatprep.subr.mxu0 0.0
    %1026 = vmatpush1.msra.mxu0 0.0
    %1027 = vmatprep.subr.mxu0 0.0
    %1028 = vmatpush1.msra.mxu0 0.0
    %1029 = vmatprep.subr.mxu0 0.0
    %1030 = vmatpush1.msra.mxu0 0.0
    %1031 = vmatprep.subr.mxu0 0.0
    %1032 = vmatpush1.msra.mxu0 0.0
    %1033 = vmatprep.subr.mxu0 0.0
    %1034 = vmatpush1.msra.mxu0 0.0
    %1035 = vmatprep.subr.mxu0 0.0
    %1036 = vmatpush1.msra.mxu0 0.0
    %1037 = vmatprep.mubr.f32.mxu0 0.0
    %1038 = vmatmul.mubr.f32.gmra.mrb[0].mxu0 %v971
    %v1039 = vpop.f32.mrb[0].mxu0
    %v1040 = vadd.f32 0.0, %v1039
    %v1041 = vpop.f32.mrb[0].mxu0
    %1042 = vdwg.mxu0
    %v1045 = vunpack.c.l.s4 1966171168
    %v1046 = vunpack.c.0.s8 %v1045
    %v1047 = vlaneseq
    %v1048 = vshrl.u32 %v1047, 7
    %v1049 = vsub.s32 %v1046, %v1048
    %v1050 = vrot.slane %v1040, %v1049
    %v1051 = vcombine.high %v1050, %v1050
    %v1053 = vunpack.c.l.s4 1966171168
    %v1054 = vunpack.c.0.s8 %v1053
    %v1055 = vlaneseq
    %v1056 = vshrl.u32 %v1055, 7
    %v1057 = vsub.s32 %v1054, %v1056
    %v1058 = vrot.slane %v1050, %v1057
    %v1060 = vunpack.c.l.s4 1966171168
    %v1061 = vunpack.c.0.s8 %v1060
    %v1062 = vlaneseq
    %v1063 = vshrl.u32 %v1062, 7
    %v1064 = vsub.s32 %v1061, %v1063
    %v1065 = vrot.slane %v1051, %v1064
    %v1068 = vadd.f32 %v963, %v1058
    %v1069 = vadd.f32 %v964, %v1065
    %1070 = vmatprep.subr.mxu0 0.0
    %1071 = vmatpush1.msra.mxu0 %v543
    %1072 = vmatprep.subr.mxu0 0.0
    %1073 = vmatpush1.msra.mxu0 %v544
    %1074 = vmatprep.subr.mxu0 0.0
    %1075 = vmatpush1.msra.mxu0 %v545
    %1076 = vmatprep.subr.mxu0 0.0
    %1077 = vmatpush1.msra.mxu0 %v546
    %1078 = vmatprep.subr.mxu0 0.0
    %1079 = vmatpush1.msra.mxu0 0.0
    %1080 = vmatprep.subr.mxu0 0.0
    %1081 = vmatpush1.msra.mxu0 0.0
    %1082 = vmatprep.subr.mxu0 0.0
    %1083 = vmatpush1.msra.mxu0 0.0
    %1084 = vmatprep.subr.mxu0 0.0
    %1085 = vmatpush1.msra.mxu0 0.0
    %1086 = vmatprep.subr.mxu0 0.0
    %1087 = vmatpush1.msra.mxu0 0.0
    %1088 = vmatprep.subr.mxu0 0.0
    %1089 = vmatpush1.msra.mxu0 0.0
    %1090 = vmatprep.subr.mxu0 0.0
    %1091 = vmatpush1.msra.mxu0 0.0
    %1092 = vmatprep.subr.mxu0 0.0
    %1093 = vmatpush1.msra.mxu0 0.0
    %1094 = vmatprep.subr.mxu0 0.0
    %1095 = vmatpush1.msra.mxu0 0.0
    %1096 = vmatprep.subr.mxu0 0.0
    %1097 = vmatpush1.msra.mxu0 0.0
    %1098 = vmatprep.subr.mxu0 0.0
    %1099 = vmatpush1.msra.mxu0 0.0
    %1100 = vmatprep.subr.mxu0 0.0
    %1101 = vmatpush1.msra.mxu0 0.0
    %1102 = vmatprep.subr.mxu0 0.0
    %1103 = vmatpush1.msra.mxu0 0.0
    %1104 = vmatprep.subr.mxu0 0.0
    %1105 = vmatpush1.msra.mxu0 0.0
    %1106 = vmatprep.subr.mxu0 0.0
    %1107 = vmatpush1.msra.mxu0 0.0
    %1108 = vmatprep.subr.mxu0 0.0
    %1109 = vmatpush1.msra.mxu0 0.0
    %1110 = vmatprep.subr.mxu0 0.0
    %1111 = vmatpush1.msra.mxu0 0.0
    %1112 = vmatprep.subr.mxu0 0.0
    %1113 = vmatpush1.msra.mxu0 0.0
    %1114 = vmatprep.subr.mxu0 0.0
    %1115 = vmatpush1.msra.mxu0 0.0
    %1116 = vmatprep.subr.mxu0 0.0
    %1117 = vmatpush1.msra.mxu0 0.0
    %1118 = vmatprep.subr.mxu0 0.0
    %1119 = vmatpush1.msra.mxu0 0.0
    %1120 = vmatprep.subr.mxu0 0.0
    %1121 = vmatpush1.msra.mxu0 0.0
    %1122 = vmatprep.subr.mxu0 0.0
    %1123 = vmatpush1.msra.mxu0 0.0
    %1124 = vmatprep.subr.mxu0 0.0
    %1125 = vmatpush1.msra.mxu0 0.0
    %1126 = vmatprep.subr.mxu0 0.0
    %1127 = vmatpush1.msra.mxu0 0.0
    %1128 = vmatprep.subr.mxu0 0.0
    %1129 = vmatpush1.msra.mxu0 0.0
    %1130 = vmatprep.subr.mxu0 0.0
    %1131 = vmatpush1.msra.mxu0 0.0
    %1132 = vmatprep.subr.mxu0 0.0
    %1133 = vmatpush1.msra.mxu0 0.0
    %1134 = vmatprep.mubr.f32.mxu0 0.0
    %1135 = vmatmul.mubr.f32.gmra.mrb[0].mxu0 %v971
    %v1136 = vpop.f32.mrb[0].mxu0
    %v1137 = vadd.f32 0.0, %v1136
    %v1138 = vpop.f32.mrb[0].mxu0
    %1139 = vdwg.mxu0
    %v1142 = vunpack.c.l.s4 1966171168
    %v1143 = vunpack.c.0.s8 %v1142
    %v1144 = vlaneseq
    %v1145 = vshrl.u32 %v1144, 7
    %v1146 = vsub.s32 %v1143, %v1145
    %v1147 = vrot.slane %v1137, %v1146
    %v1148 = vcombine.high %v1147, %v1147
    %v1150 = vunpack.c.l.s4 1966171168
    %v1151 = vunpack.c.0.s8 %v1150
    %v1152 = vlaneseq
    %v1153 = vshrl.u32 %v1152, 7
    %v1154 = vsub.s32 %v1151, %v1153
    %v1155 = vrot.slane %v1147, %v1154
    %v1157 = vunpack.c.l.s4 1966171168
    %v1158 = vunpack.c.0.s8 %v1157
    %v1159 = vlaneseq
    %v1160 = vshrl.u32 %v1159, 7
    %v1161 = vsub.s32 %v1158, %v1160
    %v1162 = vrot.slane %v1148, %v1161
    %v1165 = vadd.f32 %v1068, %v1155
    %v1166 = vadd.f32 %v1069, %v1162
    %1167 = vmatprep.subr.mxu0 0.0
    %1168 = vmatpush1.msra.mxu0 %v55
    %1169 = vmatprep.subr.mxu0 0.0
    %1170 = vmatpush1.msra.mxu0 %v56
    %1171 = vmatprep.subr.mxu0 0.0
    %1172 = vmatpush1.msra.mxu0 %v57
    %1173 = vmatprep.subr.mxu0 0.0
    %1174 = vmatpush1.msra.mxu0 %v58
    %1175 = vmatprep.subr.mxu0 0.0
    %1176 = vmatpush1.msra.mxu0 0.0
    %1177 = vmatprep.subr.mxu0 0.0
    %1178 = vmatpush1.msra.mxu0 0.0
    %1179 = vmatprep.subr.mxu0 0.0
    %1180 = vmatpush1.msra.mxu0 0.0
    %1181 = vmatprep.subr.mxu0 0.0
    %1182 = vmatpush1.msra.mxu0 0.0
    %1183 = vmatprep.subr.mxu0 0.0
    %1184 = vmatpush1.msra.mxu0 0.0
    %1185 = vmatprep.subr.mxu0 0.0
    %1186 = vmatpush1.msra.mxu0 0.0
    %1187 = vmatprep.subr.mxu0 0.0
    %1188 = vmatpush1.msra.mxu0 0.0
    %1189 = vmatprep.subr.mxu0 0.0
    %1190 = vmatpush1.msra.mxu0 0.0
    %1191 = vmatprep.subr.mxu0 0.0
    %1192 = vmatpush1.msra.mxu0 0.0
    %1193 = vmatprep.subr.mxu0 0.0
    %1194 = vmatpush1.msra.mxu0 0.0
    %1195 = vmatprep.subr.mxu0 0.0
    %1196 = vmatpush1.msra.mxu0 0.0
    %1197 = vmatprep.subr.mxu0 0.0
    %1198 = vmatpush1.msra.mxu0 0.0
    %1199 = vmatprep.subr.mxu0 0.0
    %1200 = vmatpush1.msra.mxu0 0.0
    %1201 = vmatprep.subr.mxu0 0.0
    %1202 = vmatpush1.msra.mxu0 0.0
    %1203 = vmatprep.subr.mxu0 0.0
    %1204 = vmatpush1.msra.mxu0 0.0
    %1205 = vmatprep.subr.mxu0 0.0
    %1206 = vmatpush1.msra.mxu0 0.0
    %1207 = vmatprep.subr.mxu0 0.0
    %1208 = vmatpush1.msra.mxu0 0.0
    %1209 = vmatprep.subr.mxu0 0.0
    %1210 = vmatpush1.msra.mxu0 0.0
    %1211 = vmatprep.subr.mxu0 0.0
    %1212 = vmatpush1.msra.mxu0 0.0
    %1213 = vmatprep.subr.mxu0 0.0
    %1214 = vmatpush1.msra.mxu0 0.0
    %1215 = vmatprep.subr.mxu0 0.0
    %1216 = vmatpush1.msra.mxu0 0.0
    %1217 = vmatprep.subr.mxu0 0.0
    %1218 = vmatpush1.msra.mxu0 0.0
    %1219 = vmatprep.subr.mxu0 0.0
    %1220 = vmatpush1.msra.mxu0 0.0
    %1221 = vmatprep.subr.mxu0 0.0
    %1222 = vmatpush1.msra.mxu0 0.0
    %1223 = vmatprep.subr.mxu0 0.0
    %1224 = vmatpush1.msra.mxu0 0.0
    %1225 = vmatprep.subr.mxu0 0.0
    %1226 = vmatpush1.msra.mxu0 0.0
    %1227 = vmatprep.subr.mxu0 0.0
    %1228 = vmatpush1.msra.mxu0 0.0
    %1229 = vmatprep.subr.mxu0 0.0
    %1230 = vmatpush1.msra.mxu0 0.0
    %1231 = vmatprep.mubr.f32.mxu0 0.0
    %1232 = vmatmul.mubr.f32.gmra.mrb[0].mxu0 %v866
    %v1233 = vpop.f32.mrb[0].mxu0
    %v1234 = vadd.f32 0.0, %v1233
    %v1235 = vpop.f32.mrb[0].mxu0
    %1236 = vdwg.mxu0
    %1237 = vmatprep.subr.mxu0 0.0
    %1238 = vmatpush1.msra.mxu0 %v50
    %1239 = vmatprep.subr.mxu0 0.0
    %1240 = vmatpush1.msra.mxu0 %v51
    %1241 = vmatprep.subr.mxu0 0.0
    %1242 = vmatpush1.msra.mxu0 %v52
    %1243 = vmatprep.subr.mxu0 0.0
    %1244 = vmatpush1.msra.mxu0 %v53
    %1245 = vmatprep.subr.mxu0 0.0
    %1246 = vmatpush1.msra.mxu0 0.0
    %1247 = vmatprep.subr.mxu0 0.0
    %1248 = vmatpush1.msra.mxu0 0.0
    %1249 = vmatprep.subr.mxu0 0.0
    %1250 = vmatpush1.msra.mxu0 0.0
    %1251 = vmatprep.subr.mxu0 0.0
    %1252 = vmatpush1.msra.mxu0 0.0
    %1253 = vmatprep.subr.mxu0 0.0
    %1254 = vmatpush1.msra.mxu0 0.0
    %1255 = vmatprep.subr.mxu0 0.0
    %1256 = vmatpush1.msra.mxu0 0.0
    %1257 = vmatprep.subr.mxu0 0.0
    %1258 = vmatpush1.msra.mxu0 0.0
    %1259 = vmatprep.subr.mxu0 0.0
    %1260 = vmatpush1.msra.mxu0 0.0
    %1261 = vmatprep.subr.mxu0 0.0
    %1262 = vmatpush1.msra.mxu0 0.0
    %1263 = vmatprep.subr.mxu0 0.0
    %1264 = vmatpush1.msra.mxu0 0.0
    %1265 = vmatprep.subr.mxu0 0.0
    %1266 = vmatpush1.msra.mxu0 0.0
    %1267 = vmatprep.subr.mxu0 0.0
    %1268 = vmatpush1.msra.mxu0 0.0
    %1269 = vmatprep.subr.mxu0 0.0
    %1270 = vmatpush1.msra.mxu0 0.0
    %1271 = vmatprep.subr.mxu0 0.0
    %1272 = vmatpush1.msra.mxu0 0.0
    %1273 = vmatprep.subr.mxu0 0.0
    %1274 = vmatpush1.msra.mxu0 0.0
    %1275 = vmatprep.subr.mxu0 0.0
    %1276 = vmatpush1.msra.mxu0 0.0
    %1277 = vmatprep.subr.mxu0 0.0
    %1278 = vmatpush1.msra.mxu0 0.0
    %1279 = vmatprep.subr.mxu0 0.0
    %1280 = vmatpush1.msra.mxu0 0.0
    %1281 = vmatprep.subr.mxu0 0.0
    %1282 = vmatpush1.msra.mxu0 0.0
    %1283 = vmatprep.subr.mxu0 0.0
    %1284 = vmatpush1.msra.mxu0 0.0
    %1285 = vmatprep.subr.mxu0 0.0
    %1286 = vmatpush1.msra.mxu0 0.0
    %1287 = vmatprep.subr.mxu0 0.0
    %1288 = vmatpush1.msra.mxu0 0.0
    %1289 = vmatprep.subr.mxu0 0.0
    %1290 = vmatpush1.msra.mxu0 0.0
    %1291 = vmatprep.subr.mxu0 0.0
    %1292 = vmatpush1.msra.mxu0 0.0
    %1293 = vmatprep.subr.mxu0 0.0
    %1294 = vmatpush1.msra.mxu0 0.0
    %1295 = vmatprep.subr.mxu0 0.0
    %1296 = vmatpush1.msra.mxu0 0.0
    %1297 = vmatprep.subr.mxu0 0.0
    %1298 = vmatpush1.msra.mxu0 0.0
    %1299 = vmatprep.subr.mxu0 0.0
    %1300 = vmatpush1.msra.mxu0 0.0
    %1301 = vmatprep.mubr.f32.mxu0 0.0
    %1302 = vmatmul.mubr.f32.gmra.mrb[0].mxu0 %v687
    %v1303 = vpop.f32.mrb[0].mxu0
    %v1304 = vadd.f32 %v1234, %v1303
    %v1305 = vpop.f32.mrb[0].mxu0
    %1306 = vdwg.mxu0
    %v1309 = vunpack.c.l.s4 1966171168
    %v1310 = vunpack.c.0.s8 %v1309
    %v1311 = vlaneseq
    %v1312 = vshrl.u32 %v1311, 7
    %v1313 = vsub.s32 %v1310, %v1312
    %v1314 = vrot.slane %v1304, %v1313
    %v1315 = vcombine.high %v1314, %v1314
    %v1317 = vunpack.c.l.s4 1966171168
    %v1318 = vunpack.c.0.s8 %v1317
    %v1319 = vlaneseq
    %v1320 = vshrl.u32 %v1319, 7
    %v1321 = vsub.s32 %v1318, %v1320
    %v1322 = vrot.slane %v1314, %v1321
    %v1324 = vunpack.c.l.s4 1966171168
    %v1325 = vunpack.c.0.s8 %v1324
    %v1326 = vlaneseq
    %v1327 = vshrl.u32 %v1326, 7
    %v1328 = vsub.s32 %v1325, %v1327
    %v1329 = vrot.slane %v1315, %v1328
    %1332 = vmatprep.subr.mxu0 0.0
    %1333 = vmatpush1.msra.mxu0 %v279
    %1334 = vmatprep.subr.mxu0 0.0
    %1335 = vmatpush1.msra.mxu0 %v280
    %1336 = vmatprep.subr.mxu0 0.0
    %1337 = vmatpush1.msra.mxu0 %v281
    %1338 = vmatprep.subr.mxu0 0.0
    %1339 = vmatpush1.msra.mxu0 %v282
    %1340 = vmatprep.subr.mxu0 0.0
    %1341 = vmatpush1.msra.mxu0 0.0
    %1342 = vmatprep.subr.mxu0 0.0
    %1343 = vmatpush1.msra.mxu0 0.0
    %1344 = vmatprep.subr.mxu0 0.0
    %1345 = vmatpush1.msra.mxu0 0.0
    %1346 = vmatprep.subr.mxu0 0.0
    %1347 = vmatpush1.msra.mxu0 0.0
    %1348 = vmatprep.subr.mxu0 0.0
    %1349 = vmatpush1.msra.mxu0 0.0
    %1350 = vmatprep.subr.mxu0 0.0
    %1351 = vmatpush1.msra.mxu0 0.0
    %1352 = vmatprep.subr.mxu0 0.0
    %1353 = vmatpush1.msra.mxu0 0.0
    %1354 = vmatprep.subr.mxu0 0.0
    %1355 = vmatpush1.msra.mxu0 0.0
    %1356 = vmatprep.subr.mxu0 0.0
    %1357 = vmatpush1.msra.mxu0 0.0
    %1358 = vmatprep.subr.mxu0 0.0
    %1359 = vmatpush1.msra.mxu0 0.0
    %1360 = vmatprep.subr.mxu0 0.0
    %1361 = vmatpush1.msra.mxu0 0.0
    %1362 = vmatprep.subr.mxu0 0.0
    %1363 = vmatpush1.msra.mxu0 0.0
    %1364 = vmatprep.subr.mxu0 0.0
    %1365 = vmatpush1.msra.mxu0 0.0
    %1366 = vmatprep.subr.mxu0 0.0
    %1367 = vmatpush1.msra.mxu0 0.0
    %1368 = vmatprep.subr.mxu0 0.0
    %1369 = vmatpush1.msra.mxu0 0.0
    %1370 = vmatprep.subr.mxu0 0.0
    %1371 = vmatpush1.msra.mxu0 0.0
    %1372 = vmatprep.subr.mxu0 0.0
    %1373 = vmatpush1.msra.mxu0 0.0
    %1374 = vmatprep.subr.mxu0 0.0
    %1375 = vmatpush1.msra.mxu0 0.0
    %1376 = vmatprep.subr.mxu0 0.0
    %1377 = vmatpush1.msra.mxu0 0.0
    %1378 = vmatprep.subr.mxu0 0.0
    %1379 = vmatpush1.msra.mxu0 0.0
    %1380 = vmatprep.subr.mxu0 0.0
    %1381 = vmatpush1.msra.mxu0 0.0
    %1382 = vmatprep.subr.mxu0 0.0
    %1383 = vmatpush1.msra.mxu0 0.0
    %1384 = vmatprep.subr.mxu0 0.0
    %1385 = vmatpush1.msra.mxu0 0.0
    %1386 = vmatprep.subr.mxu0 0.0
    %1387 = vmatpush1.msra.mxu0 0.0
    %1388 = vmatprep.subr.mxu0 0.0
    %1389 = vmatpush1.msra.mxu0 0.0
    %1390 = vmatprep.subr.mxu0 0.0
    %1391 = vmatpush1.msra.mxu0 0.0
    %1392 = vmatprep.subr.mxu0 0.0
    %1393 = vmatpush1.msra.mxu0 0.0
    %1394 = vmatprep.subr.mxu0 0.0
    %1395 = vmatpush1.msra.mxu0 0.0
    %1396 = vmatprep.mubr.f32.mxu0 0.0
    %1397 = vmatmul.mubr.f32.gmra.mrb[0].mxu0 %v971
    %v1398 = vpop.f32.mrb[0].mxu0
    %v1399 = vadd.f32 0.0, %v1398
    %v1400 = vpop.f32.mrb[0].mxu0
    %1401 = vdwg.mxu0
    %v1404 = vunpack.c.l.s4 1966171168
    %v1405 = vunpack.c.0.s8 %v1404
    %v1406 = vlaneseq
    %v1407 = vshrl.u32 %v1406, 7
    %v1408 = vsub.s32 %v1405, %v1407
    %v1409 = vrot.slane %v1399, %v1408
    %v1410 = vcombine.high %v1409, %v1409
    %v1412 = vunpack.c.l.s4 1966171168
    %v1413 = vunpack.c.0.s8 %v1412
    %v1414 = vlaneseq
    %v1415 = vshrl.u32 %v1414, 7
    %v1416 = vsub.s32 %v1413, %v1415
    %v1417 = vrot.slane %v1409, %v1416
    %v1419 = vunpack.c.l.s4 1966171168
    %v1420 = vunpack.c.0.s8 %v1419
    %v1421 = vlaneseq
    %v1422 = vshrl.u32 %v1421, 7
    %v1423 = vsub.s32 %v1420, %v1422
    %v1424 = vrot.slane %v1410, %v1423
    %v1427 = vadd.f32 %v1322, %v1417
    %v1428 = vadd.f32 %v1329, %v1424
    %v1429 = vadd.f32 %v1427, %v1058
    %v1430 = vadd.f32 %v1428, %v1065
    %v1431 = vadd.f32 %v1429, %v1155
    %v1432 = vadd.f32 %v1430, %v1162
    %v1435 = vlaneseq
    %v1436 = vshrl.u32 %v1435, 7
    %v1437 = vsub.s32 0, %v1436
    %v1438 = vrot.slane %v1431, %v1437
    %v1439 = vlaneseq
    %v1440 = vshrl.u32 %v1439, 7
    %v1441 = vsub.s32 0, %v1440
    %v1442 = vrot.slane %v1432, %v1441
    %v1445 = vsel %vm415, %v1165, %v1438
    %v1446 = vsel %vm415, %v1166, %v1442
    %v1447 = vld [vmem:[%s3] sm:$0x3]
    %v1448 = vadd.f32 %v1445, %v1447
    %v1449 = vadd.f32 %v1446, %v1447
    %v1450 = vsel %vm283, %v1448, -inf
    %v1451 = vrot.slane %v1450, 4
    %v1452 = vmax.f32 %v1450, %v1451
    %v1453 = vrot.slane %v1452, 2
    %v1454 = vmax.f32 %v1452, %v1453
    %v1455 = vrot.slane %v1454, 1
    %v1456 = vmax.f32 %v1454, %v1455
    %v1457 = vsel %vm283, %v1449, -inf
    %v1458 = vrot.slane %v1457, 4
    %v1459 = vmax.f32 %v1457, %v1458
    %v1460 = vrot.slane %v1459, 2
    %v1461 = vmax.f32 %v1459, %v1460
    %v1462 = vrot.slane %v1461, 1
    %v1463 = vmax.f32 %v1461, %v1462
    %v1464 = vmax.f32 %v676, %v1456
    %v1465 = vmax.f32 %v677, %v1463
    %v1466 = vld [vmem:[%s2] sm:$0x1]
    %v1468 = vlaneseq
    %v1469 = vshrl.u32 %v1468, 7
    %v1470 = vsub.s32 0, %v1469
    %v1471 = vrot.slane %v1466, %v1470
    %v1473 = vadd.f32 %v1464, %v1471
    %v1474 = vadd.f32 %v1465, %v1471
    %v1475 = vmax.f32 %v1473, 0.0
    %v1476 = vmax.f32 %v1474, 0.0
    %v1479 = vrot.slane %v1476, 7
    %v1480 = vsel %vm685, %v1479, %v1475
    %1482 = vst [vmem:[#allocation7] sm:$0x3] %v1480
    // Predicated region
    $region26: #{tpu_custom_call.1} parent=1 // pred_check
      _
    $region27: #{tpu_custom_call.1} parent=1 // pred_check_branch
      %1484 = sbr.rel (0) target = $region29
    $region28: #{tpu_custom_call.1} parent=1 // pred_region
      %s1486 = ssub.s32 32, 32
      %1487 = vsyncadd [#allocation4], %s1486
      %s1489 = sshll.u32 [#allocation7], 4
      %s1490 = int_to_ptr.vmem [resolvable:$true] %s1489
      %1492 = dma.vmem_to_hbm [thread:$0]  %s1490, 32, %s4, [#allocation4]
    $region29: #{tpu_custom_call.1} parent=1 // pred_fallthru
      _
    // Predicated region
    $region30: #{tpu_custom_call.1} parent=1 // pred_check
      _
    $region31: #{tpu_custom_call.1} parent=1 // pred_check_branch
      %1494 = sbr.rel (0) target = $region33
    $region32: #{tpu_custom_call.1} parent=1 // pred_region
      %1495 = dma.done [#allocation4], 32
    $region33: #{tpu_custom_call.1} parent=1 // pred_fallthru
      _
    %1496 = vsyncpa [#allocation3], 1
    %1497 = vsyncpa [#allocation6], 1
    %1498 = vsyncpa [#allocation4], 1

</llo_original>
